<compile_context>
chip_gen: v6e
topology: v6e:2x2x1
jax: 0.10.0
libtpu: 0.0.40
codegen_flags: <defaults>
</compile_context>

<pallas_src>
import functools

import jax
import jax.numpy as jnp
import numpy as np
from jax import lax
from jax.experimental import pallas as pl
from jax.experimental.pallas import tpu as pltpu


def _convnet_kernel(x_ref, w1_ref, b1_ref, w2_ref, b2_ref, w3_ref, b3_ref,
                    o_ref, p1_ref, p3_ref, *, H, W):
    HW = H * W
    L = x_ref.shape[1]                 # Nb * HW : folded (image, row, col) lanes

    # ---- hoisted index vectors and the 9 boundary masks (built once) -------
    lane = lax.broadcasted_iota(jnp.int32, (1, L), 1)
    if HW & (HW - 1) == 0:
        col = jnp.bitwise_and(lane, HW - 1)      # position inside the image
    else:
        col = jnp.remainder(lane, HW)
    if W & (W - 1) == 0:
        colw = jnp.bitwise_and(col, W - 1)       # j = column inside the row
    else:
        colw = jnp.remainder(col, W)

    offsets, masks = [], []
    for dy in range(3):
        for dx in range(3):
            oy, ox = dy - 1, dx - 1
            offsets.append(oy * W + ox)
            conds = []
            if oy == 1:
                conds.append(col < (H - 1) * W)
            elif oy == -1:
                conds.append(col >= W)
            if ox == 1:
                conds.append(colw < (W - 1))
            elif ox == -1:
                conds.append(colw >= 1)
            m = None
            for c in conds:
                m = c if m is None else jnp.logical_and(m, c)
            masks.append(m)

    def write_taps(a, dst_ref):
        """Write the 9 shifted, zero-padded taps of a (C, L) f32 map into a
        (9*C, L) bf16 VMEM scratch slab (tap-major im2col row order).

        Tap t = 3*dy + dx holds a[c, p + (dy-1)*W + (dx-1)] at lane p; lanes
        whose shifted source leaves the image (including cross-image lanes of
        the folded roll) are zeroed by the hoisted masks.
        """
        C = a.shape[0]
        for t in range(9):
            off = offsets[t]
            tap = a if off == 0 else pltpu.roll(a, shift=(-off) % L, axis=1)
            if masks[t] is not None:
                tap = jnp.where(masks[t], tap, 0.0)
            dst_ref[pl.ds(t * C, C), :] = tap.astype(jnp.bfloat16)

    x = x_ref[...]                                           # (Cin, L) f32

    # ---- conv1: 3x3 "same" as ONE matmul, K = 9*Cin -------------------------
    write_taps(x, p1_ref)
    h1 = jnp.dot(w1_ref[...], p1_ref[...], preferred_element_type=jnp.float32)
    h1 = jnp.maximum(h1 + b1_ref[...], 0.0)                  # (Ch, L) f32

    # ---- conv2: 1x1 -> plain channel matmul, K = Ch -------------------------
    h2 = jnp.dot(w2_ref[...], h1.astype(jnp.bfloat16),
                 preferred_element_type=jnp.float32)
    h2 = jnp.maximum(h2 + b2_ref[...], 0.0)                  # (Ch, L) f32

    # ---- conv3: 3x3 "same" as ONE matmul, K = 9*Ch ---------------------------
    write_taps(h2, p3_ref)
    out = jnp.dot(w3_ref[...], p3_ref[...], preferred_element_type=jnp.float32)

    # Lane-dense store: (Cout, Nb*HW) f32 slab -> wide unmasked vst.
    o_ref[...] = out + b3_ref[...]


def _choose_images_per_step(N, Cin, Ch, Cout, HW):
    """Pick Nb (images folded into one grid step)."""
    # Rough per-image VMEM footprint: bf16 im2col slabs + double-buffered
    # in/out blocks + f32 h1/h2 temporaries.
    per_img = (9 * Cin + 9 * Ch) * HW * 2
    per_img += (Cin + Cout) * HW * 4 * 2
    per_img += 2 * Ch * HW * 4
    budget = 8 << 20                      # stay far inside scoped VMEM (v7x: 32 MiB)
    cap = max(1, budget // per_img)

    # v7x has 2 TensorCores per chip -> keep >= 2 grid steps when the batch
    # allows it; single-TC chips (v5e/v6e) fold everything into one step.
    min_steps = 1
    try:
        if "v7" in jax.devices()[0].device_kind.lower():
            min_steps = 2
    except Exception:
        pass
    cap = min(cap, max(1, -(-N // min_steps)))

    nb = 1
    for d in range(1, N + 1):
        if N % d == 0 and d <= cap:
            nb = d
    # Non-full lane blocks must be a multiple of 128 lanes.
    if nb != N and (nb * HW) % 128 != 0:
        nb = N
    return nb


def convnet_forward(x_nchw, params, images_per_step=None):
    """ConvNet forward. x_nchw: (N, Cin, H, W) f32 -> (N, Cout, H, W) f32."""
    w1, b1, w2, b2, w3, b3 = params     # PyTorch layouts: w = (O, I, kH, kW)
    N, Cin, H, W = x_nchw.shape
    Ch = w1.shape[0]
    Cout = w3.shape[0]
    HW = H * W

    Nb = images_per_step or _choose_images_per_step(N, Cin, Ch, Cout, HW)
    assert N % Nb == 0
    steps = N // Nb
    L = Nb * HW

    # One cheap transpose: NCHW -> (C, N*H*W); lanes are flattened (n, i, j).
    x_cl = jnp.transpose(x_nchw, (1, 0, 2, 3)).reshape(Cin, N * HW)
    x_cl = x_cl.astype(jnp.float32)

    # Weight repack (wrapper-side, once).  Column order (ky, kx, c) matches
    # the tap-major im2col row order inside the kernel.  MXU operands bf16.
    w1k = jnp.transpose(w1, (0, 2, 3, 1)).reshape(Ch, 9 * Cin).astype(jnp.bfloat16)
    w3k = jnp.transpose(w3, (0, 2, 3, 1)).reshape(Cout, 9 * Ch).astype(jnp.bfloat16)
    w2k = w2[:, :, 0, 0].astype(jnp.bfloat16)                # (Ch, Ch)
    b1k = b1.reshape(Ch, 1).astype(jnp.float32)
    b2k = b2.reshape(Ch, 1).astype(jnp.float32)
    b3k = b3.reshape(Cout, 1).astype(jnp.float32)

    kernel = functools.partial(_convnet_kernel, H=H, W=W)

    out_cl = pl.pallas_call(
        kernel,
        out_shape=jax.ShapeDtypeStruct((Cout, N * HW), jnp.float32),
        grid_spec=pltpu.PrefetchScalarGridSpec(
            num_scalar_prefetch=0,
            grid=(steps,),
            in_specs=[
                pl.BlockSpec((Cin, L), lambda n: (0, n)),
                pl.BlockSpec((Ch, 9 * Cin), lambda n: (0, 0)),
                pl.BlockSpec((Ch, 1), lambda n: (0, 0)),
                pl.BlockSpec((Ch, Ch), lambda n: (0, 0)),
                pl.BlockSpec((Ch, 1), lambda n: (0, 0)),
                pl.BlockSpec((Cout, 9 * Ch), lambda n: (0, 0)),
                pl.BlockSpec((Cout, 1), lambda n: (0, 0)),
            ],
            out_specs=pl.BlockSpec((Cout, L), lambda n: (0, n)),
            scratch_shapes=[
                pltpu.VMEM((9 * Cin, L), jnp.bfloat16),   # conv1 im2col slab
                pltpu.VMEM((9 * Ch, L), jnp.bfloat16),    # conv3 im2col slab
            ],
        ),
        compiler_params=pltpu.CompilerParams(
            dimension_semantics=("parallel",)),
    )(x_cl, w1k, b1k, w2k, b2k, w3k, b3k)

    # Free reshape + one transpose back to NCHW.
    return jnp.transpose(out_cl.reshape(Cout, N, H, W), (1, 0, 2, 3))


def _reference_forward(x_nchw, params, mxu_bf16=False):
    """Plain-JAX reference (lax.conv).

    With mxu_bf16=True the matmul operands (inputs/weights) are rounded to
    bf16 exactly where the kernel rounds them, so the comparison is tight.
    """
    w1, b1, w2, b2, w3, b3 = params
    if mxu_bf16:
        rnd = lambda a: a.astype(jnp.bfloat16).astype(jnp.float32)
    else:
        rnd = lambda a: a

    def conv(x, w, b, pad):
        y = lax.conv_general_dilated(
            rnd(x), rnd(w), window_strides=(1, 1),
            padding=[(pad, pad), (pad, pad)],
            dimension_numbers=("NCHW", "OIHW", "NCHW"),
            precision=lax.Precision.HIGHEST)
        return y + b.reshape(1, -1, 1, 1)

    h = jnp.maximum(conv(x_nchw, w1, b1, 1), 0.0)
    h = jnp.maximum(conv(h, w2, b2, 0), 0.0)
    return conv(h, w3, b3, 1)


if __name__ == "__main__":
    # Small shapes consistent with the module: batch=2, in=4, hidden=32, out=8, 16x16.
    N, Cin, Ch, Cout, H, W = 2, 4, 32, 8, 16, 16

    key = jax.random.PRNGKey(0)
    ks = jax.random.split(key, 7)
    x = jax.random.normal(ks[0], (N, Cin, H, W), jnp.float32)

    # Deterministic parameter init (PyTorch conv weight shapes: O, I, kH, kW).
    w1 = jax.random.normal(ks[1], (Ch, Cin, 3, 3), jnp.float32) * 0.1
    b1 = jax.random.normal(ks[2], (Ch,), jnp.float32) * 0.1
    w2 = jax.random.normal(ks[3], (Ch, Ch, 1, 1), jnp.float32) * 0.1
    b2 = jax.random.normal(ks[4], (Ch,), jnp.float32) * 0.1
    w3 = jax.random.normal(ks[5], (Cout, Ch, 3, 3), jnp.float32) * 0.1
    b3 = jax.random.normal(ks[6], (Cout,), jnp.float32) * 0.1
    params = (w1, b1, w2, b2, w3, b3)

    out = jax.block_until_ready(jax.jit(convnet_forward)(x, params))

    # Tight check: reference computed with the same bf16-rounded MXU operands
    # (validates folded-lane im2col indexing / weight packing exactly, up to
    # accumulation order).
    ref_bf16 = jax.block_until_ready(_reference_forward(x, params, mxu_bf16=True))
    np.testing.assert_allclose(np.asarray(out), np.asarray(ref_bf16),
                               rtol=5e-3, atol=5e-3)

    # Module-semantics check against the pure-f32 reference; the tolerance
    # covers the intentional bf16 rounding of MXU operands.
    ref_f32 = jax.block_until_ready(_reference_forward(x, params, mxu_bf16=False))
    np.testing.assert_allclose(np.asarray(out), np.asarray(ref_f32),
                               rtol=5e-2, atol=5e-2)

    print("KERNEL_OK")
</pallas_src>

<mosaic_0001>
module attributes {stable_mosaic.version = 11 : i64} {
  func.func @_convnet_kernel(%arg0: i32, %arg1: memref<4x512xf32, #tpu.memory_space<vmem>>, %arg2: memref<32x36xbf16, #tpu.memory_space<vmem>>, %arg3: memref<32x1xf32, #tpu.memory_space<vmem>>, %arg4: memref<32x32xbf16, #tpu.memory_space<vmem>>, %arg5: memref<32x1xf32, #tpu.memory_space<vmem>>, %arg6: memref<8x288xbf16, #tpu.memory_space<vmem>>, %arg7: memref<8x1xf32, #tpu.memory_space<vmem>>, %arg8: memref<8x512xf32, #tpu.memory_space<vmem>>, %arg9: memref<36x512xbf16, #tpu.memory_space<vmem>>, %arg10: memref<288x512xbf16, #tpu.memory_space<vmem>>) attributes {dimension_semantics = [#tpu.dimension_semantics<parallel>], iteration_bounds = array<i64: 1>, scalar_prefetch = 0 : i64, scratch_operands = 2 : i64, tpu.core_type = #tpu.core_type<tc>, window_params = [{transform_indices = @transform_0, window_bounds = array<i64: 4, 512>}, {pipeline_mode = #tpu.pipeline_mode<synchronous>, transform_indices = @transform_1, window_bounds = array<i64: 32, 36>}, {pipeline_mode = #tpu.pipeline_mode<synchronous>, transform_indices = @transform_2, window_bounds = array<i64: 32, 1>}, {pipeline_mode = #tpu.pipeline_mode<synchronous>, transform_indices = @transform_3, window_bounds = array<i64: 32, 32>}, {pipeline_mode = #tpu.pipeline_mode<synchronous>, transform_indices = @transform_4, window_bounds = array<i64: 32, 1>}, {pipeline_mode = #tpu.pipeline_mode<synchronous>, transform_indices = @transform_5, window_bounds = array<i64: 8, 288>}, {pipeline_mode = #tpu.pipeline_mode<synchronous>, transform_indices = @transform_6, window_bounds = array<i64: 8, 1>}, {transform_indices = @transform_7, window_bounds = array<i64: 8, 512>}]} {
    %0 = tpu.iota {dimensions = array<i32: 1>} : vector<1x512xi32>
    %c255_i32 = arith.constant 255 : i32
    %1 = vector.broadcast %c255_i32 : i32 to vector<1x512xi32>
    %2 = arith.andi %0, %1 : vector<1x512xi32>
    %c15_i32 = arith.constant 15 : i32
    %3 = vector.broadcast %c15_i32 : i32 to vector<1x512xi32>
    %4 = arith.andi %2, %3 : vector<1x512xi32>
    %c16_i32 = arith.constant 16 : i32
    %5 = vector.broadcast %c16_i32 : i32 to vector<1x512xi32>
    %6 = arith.cmpi sge, %2, %5 : vector<1x512xi32>
    %c1_i32 = arith.constant 1 : i32
    %7 = vector.broadcast %c1_i32 : i32 to vector<1x512xi32>
    %8 = arith.cmpi sge, %4, %7 : vector<1x512xi32>
    %9 = arith.andi %6, %8 : vector<1x512xi1>
    %c16_i32_0 = arith.constant 16 : i32
    %10 = vector.broadcast %c16_i32_0 : i32 to vector<1x512xi32>
    %11 = arith.cmpi sge, %2, %10 : vector<1x512xi32>
    %c16_i32_1 = arith.constant 16 : i32
    %12 = vector.broadcast %c16_i32_1 : i32 to vector<1x512xi32>
    %13 = arith.cmpi sge, %2, %12 : vector<1x512xi32>
    %c15_i32_2 = arith.constant 15 : i32
    %14 = vector.broadcast %c15_i32_2 : i32 to vector<1x512xi32>
    %15 = arith.cmpi slt, %4, %14 : vector<1x512xi32>
    %16 = arith.andi %13, %15 : vector<1x512xi1>
    %c1_i32_3 = arith.constant 1 : i32
    %17 = vector.broadcast %c1_i32_3 : i32 to vector<1x512xi32>
    %18 = arith.cmpi sge, %4, %17 : vector<1x512xi32>
    %c15_i32_4 = arith.constant 15 : i32
    %19 = vector.broadcast %c15_i32_4 : i32 to vector<1x512xi32>
    %20 = arith.cmpi slt, %4, %19 : vector<1x512xi32>
    %c240_i32 = arith.constant 240 : i32
    %21 = vector.broadcast %c240_i32 : i32 to vector<1x512xi32>
    %22 = arith.cmpi slt, %2, %21 : vector<1x512xi32>
    %c1_i32_5 = arith.constant 1 : i32
    %23 = vector.broadcast %c1_i32_5 : i32 to vector<1x512xi32>
    %24 = arith.cmpi sge, %4, %23 : vector<1x512xi32>
    %25 = arith.andi %22, %24 : vector<1x512xi1>
    %c240_i32_6 = arith.constant 240 : i32
    %26 = vector.broadcast %c240_i32_6 : i32 to vector<1x512xi32>
    %27 = arith.cmpi slt, %2, %26 : vector<1x512xi32>
    %c240_i32_7 = arith.constant 240 : i32
    %28 = vector.broadcast %c240_i32_7 : i32 to vector<1x512xi32>
    %29 = arith.cmpi slt, %2, %28 : vector<1x512xi32>
    %c15_i32_8 = arith.constant 15 : i32
    %30 = vector.broadcast %c15_i32_8 : i32 to vector<1x512xi32>
    %31 = arith.cmpi slt, %4, %30 : vector<1x512xi32>
    %32 = arith.andi %29, %31 : vector<1x512xi1>
    %c0 = arith.constant 0 : index
    %c0_9 = arith.constant 0 : index
    %33 = vector.load %arg1[%c0, %c0_9] : memref<4x512xf32, #tpu.memory_space<vmem>>, vector<4x512xf32>
    %c17_i32 = arith.constant 17 : i32
    %34 = tpu.dynamic_rotate %33 by %c17_i32 dim 1 : vector<4x512xf32>, i32 -> vector<4x512xf32>
    %cst = arith.constant 0.000000e+00 : f32
    %35 = vector.shape_cast %9 : vector<1x512xi1> to vector<1x512xi1>
    %36 = vector.broadcast %35 : vector<1x512xi1> to vector<4x512xi1>
    %37 = vector.broadcast %cst : f32 to vector<4x512xf32>
    %38 = arith.select %36, %34, %37 : vector<4x512xi1>, vector<4x512xf32>
    %39 = arith.truncf %38 : vector<4x512xf32> to vector<4x512xbf16>
    %c0_10 = arith.constant 0 : index
    %c0_11 = arith.constant 0 : index
    %40 = vector.load %arg9[%c0_10, %c0_11] : memref<36x512xbf16, #tpu.memory_space<vmem>>, vector<4x512xbf16>
    tpu.vector_store %arg9[%c0_10, %c0_11], %39 {strides = array<i32>} : memref<36x512xbf16, #tpu.memory_space<vmem>>, vector<4x512xbf16>,
    %c16_i32_12 = arith.constant 16 : i32
    %41 = tpu.dynamic_rotate %33 by %c16_i32_12 dim 1 : vector<4x512xf32>, i32 -> vector<4x512xf32>
    %cst_13 = arith.constant 0.000000e+00 : f32
    %42 = vector.shape_cast %11 : vector<1x512xi1> to vector<1x512xi1>
    %43 = vector.broadcast %42 : vector<1x512xi1> to vector<4x512xi1>
    %44 = vector.broadcast %cst_13 : f32 to vector<4x512xf32>
    %45 = arith.select %43, %41, %44 : vector<4x512xi1>, vector<4x512xf32>
    %46 = arith.truncf %45 : vector<4x512xf32> to vector<4x512xbf16>
    %c4 = arith.constant 4 : index
    %c0_14 = arith.constant 0 : index
    %47 = vector.load %arg9[%c4, %c0_14] : memref<36x512xbf16, #tpu.memory_space<vmem>>, vector<4x512xbf16>
    tpu.vector_store %arg9[%c4, %c0_14], %46 {strides = array<i32>} : memref<36x512xbf16, #tpu.memory_space<vmem>>, vector<4x512xbf16>,
    %c15_i32_15 = arith.constant 15 : i32
    %48 = tpu.dynamic_rotate %33 by %c15_i32_15 dim 1 : vector<4x512xf32>, i32 -> vector<4x512xf32>
    %cst_16 = arith.constant 0.000000e+00 : f32
    %49 = vector.shape_cast %16 : vector<1x512xi1> to vector<1x512xi1>
    %50 = vector.broadcast %49 : vector<1x512xi1> to vector<4x512xi1>
    %51 = vector.broadcast %cst_16 : f32 to vector<4x512xf32>
    %52 = arith.select %50, %48, %51 : vector<4x512xi1>, vector<4x512xf32>
    %53 = arith.truncf %52 : vector<4x512xf32> to vector<4x512xbf16>
    %c8 = arith.constant 8 : index
    %c0_17 = arith.constant 0 : index
    %54 = vector.load %arg9[%c8, %c0_17] : memref<36x512xbf16, #tpu.memory_space<vmem>>, vector<4x512xbf16>
    tpu.vector_store %arg9[%c8, %c0_17], %53 {strides = array<i32>} : memref<36x512xbf16, #tpu.memory_space<vmem>>, vector<4x512xbf16>,
    %c1_i32_18 = arith.constant 1 : i32
    %55 = tpu.dynamic_rotate %33 by %c1_i32_18 dim 1 : vector<4x512xf32>, i32 -> vector<4x512xf32>
    %cst_19 = arith.constant 0.000000e+00 : f32
    %56 = vector.shape_cast %18 : vector<1x512xi1> to vector<1x512xi1>
    %57 = vector.broadcast %56 : vector<1x512xi1> to vector<4x512xi1>
    %58 = vector.broadcast %cst_19 : f32 to vector<4x512xf32>
    %59 = arith.select %57, %55, %58 : vector<4x512xi1>, vector<4x512xf32>
    %60 = arith.truncf %59 : vector<4x512xf32> to vector<4x512xbf16>
    %c12 = arith.constant 12 : index
    %c0_20 = arith.constant 0 : index
    %61 = vector.load %arg9[%c12, %c0_20] : memref<36x512xbf16, #tpu.memory_space<vmem>>, vector<4x512xbf16>
    tpu.vector_store %arg9[%c12, %c0_20], %60 {strides = array<i32>} : memref<36x512xbf16, #tpu.memory_space<vmem>>, vector<4x512xbf16>,
    %62 = arith.truncf %33 : vector<4x512xf32> to vector<4x512xbf16>
    %c16 = arith.constant 16 : index
    %c0_21 = arith.constant 0 : index
    %63 = vector.load %arg9[%c16, %c0_21] : memref<36x512xbf16, #tpu.memory_space<vmem>>, vector<4x512xbf16>
    tpu.vector_store %arg9[%c16, %c0_21], %62 {strides = array<i32>} : memref<36x512xbf16, #tpu.memory_space<vmem>>, vector<4x512xbf16>,
    %c511_i32 = arith.constant 511 : i32
    %64 = tpu.dynamic_rotate %33 by %c511_i32 dim 1 : vector<4x512xf32>, i32 -> vector<4x512xf32>
    %cst_22 = arith.constant 0.000000e+00 : f32
    %65 = vector.shape_cast %20 : vector<1x512xi1> to vector<1x512xi1>
    %66 = vector.broadcast %65 : vector<1x512xi1> to vector<4x512xi1>
    %67 = vector.broadcast %cst_22 : f32 to vector<4x512xf32>
    %68 = arith.select %66, %64, %67 : vector<4x512xi1>, vector<4x512xf32>
    %69 = arith.truncf %68 : vector<4x512xf32> to vector<4x512xbf16>
    %c20 = arith.constant 20 : index
    %c0_23 = arith.constant 0 : index
    %70 = vector.load %arg9[%c20, %c0_23] : memref<36x512xbf16, #tpu.memory_space<vmem>>, vector<4x512xbf16>
    tpu.vector_store %arg9[%c20, %c0_23], %69 {strides = array<i32>} : memref<36x512xbf16, #tpu.memory_space<vmem>>, vector<4x512xbf16>,
    %c497_i32 = arith.constant 497 : i32
    %71 = tpu.dynamic_rotate %33 by %c497_i32 dim 1 : vector<4x512xf32>, i32 -> vector<4x512xf32>
    %cst_24 = arith.constant 0.000000e+00 : f32
    %72 = vector.shape_cast %25 : vector<1x512xi1> to vector<1x512xi1>
    %73 = vector.broadcast %72 : vector<1x512xi1> to vector<4x512xi1>
    %74 = vector.broadcast %cst_24 : f32 to vector<4x512xf32>
    %75 = arith.select %73, %71, %74 : vector<4x512xi1>, vector<4x512xf32>
    %76 = arith.truncf %75 : vector<4x512xf32> to vector<4x512xbf16>
    %c24 = arith.constant 24 : index
    %c0_25 = arith.constant 0 : index
    %77 = vector.load %arg9[%c24, %c0_25] : memref<36x512xbf16, #tpu.memory_space<vmem>>, vector<4x512xbf16>
    tpu.vector_store %arg9[%c24, %c0_25], %76 {strides = array<i32>} : memref<36x512xbf16, #tpu.memory_space<vmem>>, vector<4x512xbf16>,
    %c496_i32 = arith.constant 496 : i32
    %78 = tpu.dynamic_rotate %33 by %c496_i32 dim 1 : vector<4x512xf32>, i32 -> vector<4x512xf32>
    %cst_26 = arith.constant 0.000000e+00 : f32
    %79 = vector.shape_cast %27 : vector<1x512xi1> to vector<1x512xi1>
    %80 = vector.broadcast %79 : vector<1x512xi1> to vector<4x512xi1>
    %81 = vector.broadcast %cst_26 : f32 to vector<4x512xf32>
    %82 = arith.select %80, %78, %81 : vector<4x512xi1>, vector<4x512xf32>
    %83 = arith.truncf %82 : vector<4x512xf32> to vector<4x512xbf16>
    %c28 = arith.constant 28 : index
    %c0_27 = arith.constant 0 : index
    %84 = vector.load %arg9[%c28, %c0_27] : memref<36x512xbf16, #tpu.memory_space<vmem>>, vector<4x512xbf16>
    tpu.vector_store %arg9[%c28, %c0_27], %83 {strides = array<i32>} : memref<36x512xbf16, #tpu.memory_space<vmem>>, vector<4x512xbf16>,
    %c495_i32 = arith.constant 495 : i32
    %85 = tpu.dynamic_rotate %33 by %c495_i32 dim 1 : vector<4x512xf32>, i32 -> vector<4x512xf32>
    %cst_28 = arith.constant 0.000000e+00 : f32
    %86 = vector.shape_cast %32 : vector<1x512xi1> to vector<1x512xi1>
    %87 = vector.broadcast %86 : vector<1x512xi1> to vector<4x512xi1>
    %88 = vector.broadcast %cst_28 : f32 to vector<4x512xf32>
    %89 = arith.select %87, %85, %88 : vector<4x512xi1>, vector<4x512xf32>
    %90 = arith.truncf %89 : vector<4x512xf32> to vector<4x512xbf16>
    %c32 = arith.constant 32 : index
    %c0_29 = arith.constant 0 : index
    %91 = vector.load %arg9[%c32, %c0_29] : memref<36x512xbf16, #tpu.memory_space<vmem>>, vector<4x512xbf16>
    tpu.vector_store %arg9[%c32, %c0_29], %90 {strides = array<i32>} : memref<36x512xbf16, #tpu.memory_space<vmem>>, vector<4x512xbf16>,
    %c0_30 = arith.constant 0 : index
    %c0_31 = arith.constant 0 : index
    %92 = vector.load %arg2[%c0_30, %c0_31] : memref<32x36xbf16, #tpu.memory_space<vmem>>, vector<32x36xbf16>
    %c0_32 = arith.constant 0 : index
    %c0_33 = arith.constant 0 : index
    %93 = vector.load %arg9[%c0_32, %c0_33] : memref<36x512xbf16, #tpu.memory_space<vmem>>, vector<36x512xbf16>
    %cst_34 = arith.constant dense<0.000000e+00> : vector<32x512xf32>
    %94 = tpu.matmul %92, %93, %cst_34 {dimension_numbers = #tpu.dot_dimension_numbers<[1], [0], [0], [1], [0, 0, 1, 1], [], []>} : vector<32x36xbf16>, vector<36x512xbf16>, vector<32x512xf32> -> vector<32x512xf32>
    %c0_35 = arith.constant 0 : index
    %c0_36 = arith.constant 0 : index
    %95 = vector.load %arg3[%c0_35, %c0_36] : memref<32x1xf32, #tpu.memory_space<vmem>>, vector<32x1xf32>
    %96 = vector.broadcast %95 : vector<32x1xf32> to vector<32x512xf32>
    %97 = arith.addf %94, %96 : vector<32x512xf32>
    %cst_37 = arith.constant 0.000000e+00 : f32
    %98 = vector.broadcast %cst_37 : f32 to vector<32x512xf32>
    %99 = arith.maximumf %97, %98 : vector<32x512xf32>
    %c0_38 = arith.constant 0 : index
    %c0_39 = arith.constant 0 : index
    %100 = vector.load %arg4[%c0_38, %c0_39] : memref<32x32xbf16, #tpu.memory_space<vmem>>, vector<32x32xbf16>
    %101 = arith.truncf %99 : vector<32x512xf32> to vector<32x512xbf16>
    %cst_40 = arith.constant dense<0.000000e+00> : vector<32x512xf32>
    %102 = tpu.matmul %100, %101, %cst_40 {dimension_numbers = #tpu.dot_dimension_numbers<[1], [0], [0], [1], [0, 0, 1, 1], [], []>} : vector<32x32xbf16>, vector<32x512xbf16>, vector<32x512xf32> -> vector<32x512xf32>
    %c0_41 = arith.constant 0 : index
    %c0_42 = arith.constant 0 : index
    %103 = vector.load %arg5[%c0_41, %c0_42] : memref<32x1xf32, #tpu.memory_space<vmem>>, vector<32x1xf32>
    %104 = vector.broadcast %103 : vector<32x1xf32> to vector<32x512xf32>
    %105 = arith.addf %102, %104 : vector<32x512xf32>
    %cst_43 = arith.constant 0.000000e+00 : f32
    %106 = vector.broadcast %cst_43 : f32 to vector<32x512xf32>
    %107 = arith.maximumf %105, %106 : vector<32x512xf32>
    %c17_i32_44 = arith.constant 17 : i32
    %108 = tpu.dynamic_rotate %107 by %c17_i32_44 dim 1 : vector<32x512xf32>, i32 -> vector<32x512xf32>
    %cst_45 = arith.constant 0.000000e+00 : f32
    %109 = vector.shape_cast %9 : vector<1x512xi1> to vector<1x512xi1>
    %110 = vector.broadcast %109 : vector<1x512xi1> to vector<32x512xi1>
    %111 = vector.broadcast %cst_45 : f32 to vector<32x512xf32>
    %112 = arith.select %110, %108, %111 : vector<32x512xi1>, vector<32x512xf32>
    %113 = arith.truncf %112 : vector<32x512xf32> to vector<32x512xbf16>
    %c0_46 = arith.constant 0 : index
    %c0_47 = arith.constant 0 : index
    %114 = vector.load %arg10[%c0_46, %c0_47] : memref<288x512xbf16, #tpu.memory_space<vmem>>, vector<32x512xbf16>
    tpu.vector_store %arg10[%c0_46, %c0_47], %113 {strides = array<i32>} : memref<288x512xbf16, #tpu.memory_space<vmem>>, vector<32x512xbf16>,
    %c16_i32_48 = arith.constant 16 : i32
    %115 = tpu.dynamic_rotate %107 by %c16_i32_48 dim 1 : vector<32x512xf32>, i32 -> vector<32x512xf32>
    %cst_49 = arith.constant 0.000000e+00 : f32
    %116 = vector.shape_cast %11 : vector<1x512xi1> to vector<1x512xi1>
    %117 = vector.broadcast %116 : vector<1x512xi1> to vector<32x512xi1>
    %118 = vector.broadcast %cst_49 : f32 to vector<32x512xf32>
    %119 = arith.select %117, %115, %118 : vector<32x512xi1>, vector<32x512xf32>
    %120 = arith.truncf %119 : vector<32x512xf32> to vector<32x512xbf16>
    %c32_50 = arith.constant 32 : index
    %c0_51 = arith.constant 0 : index
    %121 = vector.load %arg10[%c32_50, %c0_51] : memref<288x512xbf16, #tpu.memory_space<vmem>>, vector<32x512xbf16>
    tpu.vector_store %arg10[%c32_50, %c0_51], %120 {strides = array<i32>} : memref<288x512xbf16, #tpu.memory_space<vmem>>, vector<32x512xbf16>,
    %c15_i32_52 = arith.constant 15 : i32
    %122 = tpu.dynamic_rotate %107 by %c15_i32_52 dim 1 : vector<32x512xf32>, i32 -> vector<32x512xf32>
    %cst_53 = arith.constant 0.000000e+00 : f32
    %123 = vector.shape_cast %16 : vector<1x512xi1> to vector<1x512xi1>
    %124 = vector.broadcast %123 : vector<1x512xi1> to vector<32x512xi1>
    %125 = vector.broadcast %cst_53 : f32 to vector<32x512xf32>
    %126 = arith.select %124, %122, %125 : vector<32x512xi1>, vector<32x512xf32>
    %127 = arith.truncf %126 : vector<32x512xf32> to vector<32x512xbf16>
    %c64 = arith.constant 64 : index
    %c0_54 = arith.constant 0 : index
    %128 = vector.load %arg10[%c64, %c0_54] : memref<288x512xbf16, #tpu.memory_space<vmem>>, vector<32x512xbf16>
    tpu.vector_store %arg10[%c64, %c0_54], %127 {strides = array<i32>} : memref<288x512xbf16, #tpu.memory_space<vmem>>, vector<32x512xbf16>,
    %c1_i32_55 = arith.constant 1 : i32
    %129 = tpu.dynamic_rotate %107 by %c1_i32_55 dim 1 : vector<32x512xf32>, i32 -> vector<32x512xf32>
    %cst_56 = arith.constant 0.000000e+00 : f32
    %130 = vector.shape_cast %18 : vector<1x512xi1> to vector<1x512xi1>
    %131 = vector.broadcast %130 : vector<1x512xi1> to vector<32x512xi1>
    %132 = vector.broadcast %cst_56 : f32 to vector<32x512xf32>
    %133 = arith.select %131, %129, %132 : vector<32x512xi1>, vector<32x512xf32>
    %134 = arith.truncf %133 : vector<32x512xf32> to vector<32x512xbf16>
    %c96 = arith.constant 96 : index
    %c0_57 = arith.constant 0 : index
    %135 = vector.load %arg10[%c96, %c0_57] : memref<288x512xbf16, #tpu.memory_space<vmem>>, vector<32x512xbf16>
    tpu.vector_store %arg10[%c96, %c0_57], %134 {strides = array<i32>} : memref<288x512xbf16, #tpu.memory_space<vmem>>, vector<32x512xbf16>,
    %136 = arith.truncf %107 : vector<32x512xf32> to vector<32x512xbf16>
    %c128 = arith.constant 128 : index
    %c0_58 = arith.constant 0 : index
    %137 = vector.load %arg10[%c128, %c0_58] : memref<288x512xbf16, #tpu.memory_space<vmem>>, vector<32x512xbf16>
    tpu.vector_store %arg10[%c128, %c0_58], %136 {strides = array<i32>} : memref<288x512xbf16, #tpu.memory_space<vmem>>, vector<32x512xbf16>,
    %c511_i32_59 = arith.constant 511 : i32
    %138 = tpu.dynamic_rotate %107 by %c511_i32_59 dim 1 : vector<32x512xf32>, i32 -> vector<32x512xf32>
    %cst_60 = arith.constant 0.000000e+00 : f32
    %139 = vector.shape_cast %20 : vector<1x512xi1> to vector<1x512xi1>
    %140 = vector.broadcast %139 : vector<1x512xi1> to vector<32x512xi1>
    %141 = vector.broadcast %cst_60 : f32 to vector<32x512xf32>
    %142 = arith.select %140, %138, %141 : vector<32x512xi1>, vector<32x512xf32>
    %143 = arith.truncf %142 : vector<32x512xf32> to vector<32x512xbf16>
    %c160 = arith.constant 160 : index
    %c0_61 = arith.constant 0 : index
    %144 = vector.load %arg10[%c160, %c0_61] : memref<288x512xbf16, #tpu.memory_space<vmem>>, vector<32x512xbf16>
    tpu.vector_store %arg10[%c160, %c0_61], %143 {strides = array<i32>} : memref<288x512xbf16, #tpu.memory_space<vmem>>, vector<32x512xbf16>,
    %c497_i32_62 = arith.constant 497 : i32
    %145 = tpu.dynamic_rotate %107 by %c497_i32_62 dim 1 : vector<32x512xf32>, i32 -> vector<32x512xf32>
    %cst_63 = arith.constant 0.000000e+00 : f32
    %146 = vector.shape_cast %25 : vector<1x512xi1> to vector<1x512xi1>
    %147 = vector.broadcast %146 : vector<1x512xi1> to vector<32x512xi1>
    %148 = vector.broadcast %cst_63 : f32 to vector<32x512xf32>
    %149 = arith.select %147, %145, %148 : vector<32x512xi1>, vector<32x512xf32>
    %150 = arith.truncf %149 : vector<32x512xf32> to vector<32x512xbf16>
    %c192 = arith.constant 192 : index
    %c0_64 = arith.constant 0 : index
    %151 = vector.load %arg10[%c192, %c0_64] : memref<288x512xbf16, #tpu.memory_space<vmem>>, vector<32x512xbf16>
    tpu.vector_store %arg10[%c192, %c0_64], %150 {strides = array<i32>} : memref<288x512xbf16, #tpu.memory_space<vmem>>, vector<32x512xbf16>,
    %c496_i32_65 = arith.constant 496 : i32
    %152 = tpu.dynamic_rotate %107 by %c496_i32_65 dim 1 : vector<32x512xf32>, i32 -> vector<32x512xf32>
    %cst_66 = arith.constant 0.000000e+00 : f32
    %153 = vector.shape_cast %27 : vector<1x512xi1> to vector<1x512xi1>
    %154 = vector.broadcast %153 : vector<1x512xi1> to vector<32x512xi1>
    %155 = vector.broadcast %cst_66 : f32 to vector<32x512xf32>
    %156 = arith.select %154, %152, %155 : vector<32x512xi1>, vector<32x512xf32>
    %157 = arith.truncf %156 : vector<32x512xf32> to vector<32x512xbf16>
    %c224 = arith.constant 224 : index
    %c0_67 = arith.constant 0 : index
    %158 = vector.load %arg10[%c224, %c0_67] : memref<288x512xbf16, #tpu.memory_space<vmem>>, vector<32x512xbf16>
    tpu.vector_store %arg10[%c224, %c0_67], %157 {strides = array<i32>} : memref<288x512xbf16, #tpu.memory_space<vmem>>, vector<32x512xbf16>,
    %c495_i32_68 = arith.constant 495 : i32
    %159 = tpu.dynamic_rotate %107 by %c495_i32_68 dim 1 : vector<32x512xf32>, i32 -> vector<32x512xf32>
    %cst_69 = arith.constant 0.000000e+00 : f32
    %160 = vector.shape_cast %32 : vector<1x512xi1> to vector<1x512xi1>
    %161 = vector.broadcast %160 : vector<1x512xi1> to vector<32x512xi1>
    %162 = vector.broadcast %cst_69 : f32 to vector<32x512xf32>
    %163 = arith.select %161, %159, %162 : vector<32x512xi1>, vector<32x512xf32>
    %164 = arith.truncf %163 : vector<32x512xf32> to vector<32x512xbf16>
    %c256 = arith.constant 256 : index
    %c0_70 = arith.constant 0 : index
    %165 = vector.load %arg10[%c256, %c0_70] : memref<288x512xbf16, #tpu.memory_space<vmem>>, vector<32x512xbf16>
    tpu.vector_store %arg10[%c256, %c0_70], %164 {strides = array<i32>} : memref<288x512xbf16, #tpu.memory_space<vmem>>, vector<32x512xbf16>,
    %c0_71 = arith.constant 0 : index
    %c0_72 = arith.constant 0 : index
    %166 = vector.load %arg6[%c0_71, %c0_72] : memref<8x288xbf16, #tpu.memory_space<vmem>>, vector<8x288xbf16>
    %c0_73 = arith.constant 0 : index
    %c0_74 = arith.constant 0 : index
    %167 = vector.load %arg10[%c0_73, %c0_74] : memref<288x512xbf16, #tpu.memory_space<vmem>>, vector<288x512xbf16>
    %cst_75 = arith.constant dense<0.000000e+00> : vector<8x512xf32>
    %168 = tpu.matmul %166, %167, %cst_75 {dimension_numbers = #tpu.dot_dimension_numbers<[1], [0], [0], [1], [0, 0, 1, 1], [], []>} : vector<8x288xbf16>, vector<288x512xbf16>, vector<8x512xf32> -> vector<8x512xf32>
    %c0_76 = arith.constant 0 : index
    %c0_77 = arith.constant 0 : index
    %169 = vector.load %arg7[%c0_76, %c0_77] : memref<8x1xf32, #tpu.memory_space<vmem>>, vector<8x1xf32>
    %170 = vector.broadcast %169 : vector<8x1xf32> to vector<8x512xf32>
    %171 = arith.addf %168, %170 : vector<8x512xf32>
    %c0_78 = arith.constant 0 : index
    %c0_79 = arith.constant 0 : index
    %172 = vector.load %arg8[%c0_78, %c0_79] : memref<8x512xf32, #tpu.memory_space<vmem>>, vector<8x512xf32>
    tpu.vector_store %arg8[%c0_78, %c0_79], %171 {strides = array<i32>} : memref<8x512xf32, #tpu.memory_space<vmem>>, vector<8x512xf32>,
    return
  }
  func.func @transform_0(%arg0: i32) -> (i32, i32) {
    %c0_i32 = arith.constant 0 : i32
    %c0_i32_0 = arith.constant 0 : i32
    return %c0_i32, %arg0 : i32, i32
  }
  func.func @transform_1(%arg0: i32) -> (i32, i32) {
    %c0_i32 = arith.constant 0 : i32
    %c0_i32_0 = arith.constant 0 : i32
    %c0_i32_1 = arith.constant 0 : i32
    return %c0_i32, %c0_i32_0 : i32, i32
  }
  func.func @transform_2(%arg0: i32) -> (i32, i32) {
    %c0_i32 = arith.constant 0 : i32
    %c0_i32_0 = arith.constant 0 : i32
    %c0_i32_1 = arith.constant 0 : i32
    return %c0_i32, %c0_i32_0 : i32, i32
  }
  func.func @transform_3(%arg0: i32) -> (i32, i32) {
    %c0_i32 = arith.constant 0 : i32
    %c0_i32_0 = arith.constant 0 : i32
    %c0_i32_1 = arith.constant 0 : i32
    return %c0_i32, %c0_i32_0 : i32, i32
  }
  func.func @transform_4(%arg0: i32) -> (i32, i32) {
    %c0_i32 = arith.constant 0 : i32
    %c0_i32_0 = arith.constant 0 : i32
    %c0_i32_1 = arith.constant 0 : i32
    return %c0_i32, %c0_i32_0 : i32, i32
  }
  func.func @transform_5(%arg0: i32) -> (i32, i32) {
    %c0_i32 = arith.constant 0 : i32
    %c0_i32_0 = arith.constant 0 : i32
    %c0_i32_1 = arith.constant 0 : i32
    return %c0_i32, %c0_i32_0 : i32, i32
  }
  func.func @transform_6(%arg0: i32) -> (i32, i32) {
    %c0_i32 = arith.constant 0 : i32
    %c0_i32_0 = arith.constant 0 : i32
    %c0_i32_1 = arith.constant 0 : i32
    return %c0_i32, %c0_i32_0 : i32, i32
  }
  func.func @transform_7(%arg0: i32) -> (i32, i32) {
    %c0_i32 = arith.constant 0 : i32
    %c0_i32_0 = arith.constant 0 : i32
    return %c0_i32, %arg0 : i32, i32
  }
}

</mosaic_0001>

<llo_original>
// kernel: convnet_forward.1
$region0: #{convnet_forward.1}
  #allocation0 [shape = 'u32[]', space=smem, size = 0x4, offset = 0x4, fixed_abs, tag = 'smem constant byte address 0x4 - core index']
  #allocation1 [shape = 'u32[144,128]{1,0:T(1,128)}', space=vmem, size = 0x12000, scoped, tag = 'internal scratch']
  #allocation2 [shape = 'bf16[36,512]{1,0:T(8,128)(2,1)}', space=vmem, size = 0xa000, scoped, tag = 'scratch operand']
  #allocation3 [shape = 'bf16[288,512]{1,0:T(8,128)(2,1)}', space=vmem, size = 0x48000, scoped, tag = 'scratch operand']
  %s0 = inlined_call_operand.vmem [shape: f32[4,512], index: 0, kind: input, shape index: {}]
  %s1 = inlined_call_operand.vmem [shape: bf16[32,36], index: 1, kind: input, shape index: {}]
  %s2 = inlined_call_operand.vmem [shape: f32[32,1], index: 2, kind: input, shape index: {}]
  %s3 = inlined_call_operand.vmem [shape: bf16[32,32], index: 3, kind: input, shape index: {}]
  %s4 = inlined_call_operand.vmem [shape: f32[32,1], index: 4, kind: input, shape index: {}]
  %s5 = inlined_call_operand.vmem [shape: bf16[8,288], index: 5, kind: input, shape index: {}]
  %s6 = inlined_call_operand.vmem [shape: f32[8,1], index: 6, kind: input, shape index: {}]
  %s7 = inlined_call_operand.vmem [shape: f32[8,512], index: 7, kind: output, shape index: {}]
  %s8 = sld [smem:[#allocation0]]
  $region38: #{convnet_forward.1} parent=0
    _
  %s10 = ssub.s32 1, %s8
  %s11 = scalar_select 0, %s10, %s8
  // Predicated region
  $region2: #{convnet_forward.1} parent=0 // pred_check
    _
  $region3: #{convnet_forward.1} parent=0 // pred_check_branch
    %13 = sbr.rel (0) target = $region5
  $region4: #{convnet_forward.1} parent=0 // pred_region
    _
  $region5: #{convnet_forward.1} parent=0 // pred_fallthru
    _
  // Predicated region
  $region6: #{convnet_forward.1} parent=0 // pred_check
    _
  $region7: #{convnet_forward.1} parent=0 // pred_check_branch
    %15 = sbr.rel (0) target = $region9
  $region8: #{convnet_forward.1} parent=0 // pred_region
    _
  $region9: #{convnet_forward.1} parent=0 // pred_fallthru
    _
  // Predicated region
  $region10: #{convnet_forward.1} parent=0 // pred_check
    _
  $region11: #{convnet_forward.1} parent=0 // pred_check_branch
    %17 = sbr.rel (0) target = $region13
  $region12: #{convnet_forward.1} parent=0 // pred_region
    _
  $region13: #{convnet_forward.1} parent=0 // pred_fallthru
    _
  // Predicated region
  $region14: #{convnet_forward.1} parent=0 // pred_check
    _
  $region15: #{convnet_forward.1} parent=0 // pred_check_branch
    %19 = sbr.rel (0) target = $region17
  $region16: #{convnet_forward.1} parent=0 // pred_region
    _
  $region17: #{convnet_forward.1} parent=0 // pred_fallthru
    _
  // Predicated region
  $region18: #{convnet_forward.1} parent=0 // pred_check
    _
  $region19: #{convnet_forward.1} parent=0 // pred_check_branch
    %21 = sbr.rel (0) target = $region21
  $region20: #{convnet_forward.1} parent=0 // pred_region
    _
  $region21: #{convnet_forward.1} parent=0 // pred_fallthru
    _
  // Predicated region
  $region22: #{convnet_forward.1} parent=0 // pred_check
    _
  $region23: #{convnet_forward.1} parent=0 // pred_check_branch
    %23 = sbr.rel (0) target = $region25
  $region24: #{convnet_forward.1} parent=0 // pred_region
    _
  $region25: #{convnet_forward.1} parent=0 // pred_fallthru
    _
  // Predicated region
  $region26: #{convnet_forward.1} parent=0 // pred_check
    _
  $region27: #{convnet_forward.1} parent=0 // pred_check_branch
    %25 = sbr.rel (0) target = $region29
  $region28: #{convnet_forward.1} parent=0 // pred_region
    _
  $region29: #{convnet_forward.1} parent=0 // pred_fallthru
    _
  %v27 = vlaneseq
  %v28 = vand.u32 %v27, 127
  %v29 = vadd.s32 %v28, 128
  %v30 = vadd.s32 %v28, 256
  %v31 = vadd.s32 %v28, 384
  %v32 = vand.u32 %v28, 255
  %v33 = vand.u32 %v29, 255
  %v34 = vand.u32 %v30, 255
  %v35 = vand.u32 %v31, 255
  %v36 = vand.u32 %v32, 15
  %v37 = vand.u32 %v33, 15
  %v38 = vand.u32 %v34, 15
  %v39 = vand.u32 %v35, 15
  %vm40 = vcmp.ge.s32.totalorder %v32, 16
  %vm41 = vcmp.ge.s32.totalorder %v33, 16
  %vm42 = vcmp.ge.s32.totalorder %v34, 16
  %vm43 = vcmp.ge.s32.totalorder %v35, 16
  %vm44 = vcmp.ge.s32.totalorder %v36, 1
  %vm45 = vcmp.ge.s32.totalorder %v37, 1
  %vm46 = vcmp.ge.s32.totalorder %v38, 1
  %vm47 = vcmp.ge.s32.totalorder %v39, 1
  %vm48 = vmand %vm40, %vm44
  %vm49 = vmand %vm41, %vm45
  %vm50 = vmand %vm42, %vm46
  %vm51 = vmand %vm43, %vm47
  %vm52 = vcmp.lt.s32.totalorder %v36, 15
  %vm53 = vcmp.lt.s32.totalorder %v37, 15
  %vm54 = vcmp.lt.s32.totalorder %v38, 15
  %vm55 = vcmp.lt.s32.totalorder %v39, 15
  %vm56 = vmand %vm40, %vm52
  %vm57 = vmand %vm41, %vm53
  %vm58 = vmand %vm42, %vm54
  %vm59 = vmand %vm43, %vm55
  %vm60 = vcmp.lt.s32.totalorder %v32, 240
  %vm61 = vcmp.lt.s32.totalorder %v33, 240
  %vm62 = vcmp.lt.s32.totalorder %v34, 240
  %vm63 = vcmp.lt.s32.totalorder %v35, 240
  %vm64 = vmand %vm60, %vm44
  %vm65 = vmand %vm61, %vm45
  %vm66 = vmand %vm62, %vm46
  %vm67 = vmand %vm63, %vm47
  %vm68 = vmand %vm60, %vm52
  %vm69 = vmand %vm61, %vm53
  %vm70 = vmand %vm62, %vm54
  %vm71 = vmand %vm63, %vm55
  %v72 = vld [vmem:[%s0] sm:$0xff]
  %v73 = vld [vmem:[%s0 + $0x8] sm:$0xff]
  %v76 = vcombine.high %v72, %v72
  %v77 = vcombine.high %v73, %v73
  %80 = vrot.lane.b32.xlu0 %v72, 17
  %v81 = vpop.permute.xlu0 %80
  %82 = vrot.lane.b32.xlu0 %v76, 17
  %v83 = vpop.permute.xlu0 %82
  %84 = vrot.lane.b32.xlu0 %v73, 17
  %v85 = vpop.permute.xlu0 %84
  %86 = vrot.lane.b32.xlu0 %v77, 17
  %v87 = vpop.permute.xlu0 %86
  %vm88 = vcmp.lt.s32.totalorder %v28, 17
  %v89 = vsel %vm88, %v85, %v87
  %v90 = vsel %vm88, %v83, %v85
  %v91 = vsel %vm88, %v81, %v83
  %v92 = vsel %vm88, %v87, %v81
  %v93 = vsel %vm48, 1, 0
  %v94 = vsel %vm49, 1, 0
  %v95 = vsel %vm50, 1, 0
  %v96 = vsel %vm51, 1, 0
  %vm97 = vcmp.eq.s32.totalorder %v93, 1
  %vm98 = vcmp.eq.s32.totalorder %v94, 1
  %vm99 = vcmp.eq.s32.totalorder %v95, 1
  %vm100 = vcmp.eq.s32.totalorder %v96, 1
  %v101 = vsel %vm97, %v92, 0.0
  %v102 = vsel %vm98, %v91, 0.0
  %v103 = vsel %vm99, %v90, 0.0
  %v104 = vsel %vm100, %v89, 0.0
  %v105 = vpack.c.bf16 %v101, %v101
  %v106 = vpack.c.bf16 %v102, %v102
  %v107 = vpack.c.bf16 %v103, %v103
  %v108 = vpack.c.bf16 %v104, %v104
  %v113 = vunpack.c.l.b16 %v105
  %v114 = vunpack.c.l.b16 %v106
  %v115 = vunpack.c.l.b16 %v107
  %v116 = vunpack.c.l.b16 %v108
  %v117 = vpack.c.b16 %v114, %v113
  %v118 = vpack.c.b16 %v116, %v115
  %121 = vst [vmem:[#allocation2] sm:$0x33] %v117
  %122 = vst [vmem:[#allocation2 + $0x8] sm:$0x33] %v118
  %123 = vrot.lane.b32.xlu0 %v72, 16
  %v124 = vpop.permute.xlu0 %123
  %125 = vrot.lane.b32.xlu0 %v76, 16
  %v126 = vpop.permute.xlu0 %125
  %127 = vrot.lane.b32.xlu0 %v73, 16
  %v128 = vpop.permute.xlu0 %127
  %129 = vrot.lane.b32.xlu0 %v77, 16
  %v130 = vpop.permute.xlu0 %129
  %vm131 = vcmp.lt.s32.totalorder %v28, 16
  %v132 = vsel %vm131, %v128, %v130
  %v133 = vsel %vm131, %v126, %v128
  %v134 = vsel %vm131, %v124, %v126
  %v135 = vsel %vm131, %v130, %v124
  %v136 = vsel %vm40, 1, 0
  %v137 = vsel %vm41, 1, 0
  %v138 = vsel %vm42, 1, 0
  %v139 = vsel %vm43, 1, 0
  %vm140 = vcmp.eq.s32.totalorder %v136, 1
  %vm141 = vcmp.eq.s32.totalorder %v137, 1
  %vm142 = vcmp.eq.s32.totalorder %v138, 1
  %vm143 = vcmp.eq.s32.totalorder %v139, 1
  %v144 = vsel %vm140, %v135, 0.0
  %v145 = vsel %vm141, %v134, 0.0
  %v146 = vsel %vm142, %v133, 0.0
  %v147 = vsel %vm143, %v132, 0.0
  %v148 = vpack.c.bf16 %v144, %v144
  %v149 = vpack.c.bf16 %v145, %v145
  %v150 = vpack.c.bf16 %v146, %v146
  %v151 = vpack.c.bf16 %v147, %v147
  %v156 = vunpack.c.l.b16 %v148
  %v157 = vunpack.c.l.b16 %v149
  %v158 = vunpack.c.l.b16 %v150
  %v159 = vunpack.c.l.b16 %v151
  %v160 = vpack.c.b16 %v157, %v156
  %v161 = vpack.c.b16 %v159, %v158
  %v162 = vrot.slane %v160, 6
  %v163 = vrot.slane %v161, 6
  %166 = vst [vmem:[#allocation2] sm:$0xcc] %v162
  %167 = vst [vmem:[#allocation2 + $0x8] sm:$0xcc] %v163
  %168 = vrot.lane.b32.xlu0 %v72, 15
  %v169 = vpop.permute.xlu0 %168
  %170 = vrot.lane.b32.xlu0 %v76, 15
  %v171 = vpop.permute.xlu0 %170
  %172 = vrot.lane.b32.xlu0 %v73, 15
  %v173 = vpop.permute.xlu0 %172
  %174 = vrot.lane.b32.xlu0 %v77, 15
  %v175 = vpop.permute.xlu0 %174
  %vm176 = vcmp.lt.s32.totalorder %v28, 15
  %v177 = vsel %vm176, %v173, %v175
  %v178 = vsel %vm176, %v171, %v173
  %v179 = vsel %vm176, %v169, %v171
  %v180 = vsel %vm176, %v175, %v169
  %v181 = vsel %vm56, 1, 0
  %v182 = vsel %vm57, 1, 0
  %v183 = vsel %vm58, 1, 0
  %v184 = vsel %vm59, 1, 0
  %vm185 = vcmp.eq.s32.totalorder %v181, 1
  %vm186 = vcmp.eq.s32.totalorder %v182, 1
  %vm187 = vcmp.eq.s32.totalorder %v183, 1
  %vm188 = vcmp.eq.s32.totalorder %v184, 1
  %v189 = vsel %vm185, %v180, 0.0
  %v190 = vsel %vm186, %v179, 0.0
  %v191 = vsel %vm187, %v178, 0.0
  %v192 = vsel %vm188, %v177, 0.0
  %v193 = vpack.c.bf16 %v189, %v189
  %v194 = vpack.c.bf16 %v190, %v190
  %v195 = vpack.c.bf16 %v191, %v191
  %v196 = vpack.c.bf16 %v192, %v192
  %v201 = vunpack.c.l.b16 %v193
  %v202 = vunpack.c.l.b16 %v194
  %v203 = vunpack.c.l.b16 %v195
  %v204 = vunpack.c.l.b16 %v196
  %v205 = vpack.c.b16 %v202, %v201
  %v206 = vpack.c.b16 %v204, %v203
  %209 = vst [vmem:[#allocation2 + $0x10] sm:$0x33] %v205
  %210 = vst [vmem:[#allocation2 + $0x18] sm:$0x33] %v206
  %211 = vrot.lane.b32.xlu0 %v72, 1
  %v212 = vpop.permute.xlu0 %211
  %213 = vrot.lane.b32.xlu0 %v76, 1
  %v214 = vpop.permute.xlu0 %213
  %215 = vrot.lane.b32.xlu0 %v73, 1
  %v216 = vpop.permute.xlu0 %215
  %217 = vrot.lane.b32.xlu0 %v77, 1
  %v218 = vpop.permute.xlu0 %217
  %vm219 = vcmp.lt.s32.totalorder %v28, 1
  %v220 = vsel %vm219, %v216, %v218
  %v221 = vsel %vm219, %v214, %v216
  %v222 = vsel %vm219, %v212, %v214
  %v223 = vsel %vm219, %v218, %v212
  %v224 = vsel %vm44, 1, 0
  %v225 = vsel %vm45, 1, 0
  %v226 = vsel %vm46, 1, 0
  %v227 = vsel %vm47, 1, 0
  %vm228 = vcmp.eq.s32.totalorder %v224, 1
  %vm229 = vcmp.eq.s32.totalorder %v225, 1
  %vm230 = vcmp.eq.s32.totalorder %v226, 1
  %vm231 = vcmp.eq.s32.totalorder %v227, 1
  %v232 = vsel %vm228, %v223, 0.0
  %v233 = vsel %vm229, %v222, 0.0
  %v234 = vsel %vm230, %v221, 0.0
  %v235 = vsel %vm231, %v220, 0.0
  %v236 = vpack.c.bf16 %v232, %v232
  %v237 = vpack.c.bf16 %v233, %v233
  %v238 = vpack.c.bf16 %v234, %v234
  %v239 = vpack.c.bf16 %v235, %v235
  %v244 = vunpack.c.l.b16 %v236
  %v245 = vunpack.c.l.b16 %v237
  %v246 = vunpack.c.l.b16 %v238
  %v247 = vunpack.c.l.b16 %v239
  %v248 = vpack.c.b16 %v245, %v244
  %v249 = vpack.c.b16 %v247, %v246
  %v250 = vrot.slane %v248, 6
  %v251 = vrot.slane %v249, 6
  %254 = vst [vmem:[#allocation2 + $0x10] sm:$0xcc] %v250
  %255 = vst [vmem:[#allocation2 + $0x18] sm:$0xcc] %v251
  %v256 = vpack.c.bf16 %v72, %v72
  %v257 = vpack.c.bf16 %v76, %v76
  %v258 = vpack.c.bf16 %v73, %v73
  %v259 = vpack.c.bf16 %v77, %v77
  %v264 = vunpack.c.l.b16 %v256
  %v265 = vunpack.c.l.b16 %v257
  %v266 = vunpack.c.l.b16 %v258
  %v267 = vunpack.c.l.b16 %v259
  %v268 = vpack.c.b16 %v265, %v264
  %v269 = vpack.c.b16 %v267, %v266
  %272 = vst [vmem:[#allocation2 + $0x20] sm:$0x33] %v268
  %273 = vst [vmem:[#allocation2 + $0x28] sm:$0x33] %v269
  %274 = vrot.lane.b32.xlu0 %v72, 127
  %v275 = vpop.permute.xlu0 %274
  %276 = vrot.lane.b32.xlu0 %v76, 127
  %v277 = vpop.permute.xlu0 %276
  %278 = vrot.lane.b32.xlu0 %v73, 127
  %v279 = vpop.permute.xlu0 %278
  %280 = vrot.lane.b32.xlu0 %v77, 127
  %v281 = vpop.permute.xlu0 %280
  %vm282 = vcmp.lt.s32.totalorder %v28, 127
  %v283 = vsel %vm282, %v279, %v281
  %v284 = vsel %vm282, %v277, %v279
  %v285 = vsel %vm282, %v275, %v277
  %v286 = vsel %vm282, %v281, %v275
  %v287 = vsel %vm52, 1, 0
  %v288 = vsel %vm53, 1, 0
  %v289 = vsel %vm54, 1, 0
  %v290 = vsel %vm55, 1, 0
  %vm291 = vcmp.eq.s32.totalorder %v287, 1
  %vm292 = vcmp.eq.s32.totalorder %v288, 1
  %vm293 = vcmp.eq.s32.totalorder %v289, 1
  %vm294 = vcmp.eq.s32.totalorder %v290, 1
  %v295 = vsel %vm291, %v285, 0.0
  %v296 = vsel %vm292, %v284, 0.0
  %v297 = vsel %vm293, %v283, 0.0
  %v298 = vsel %vm294, %v286, 0.0
  %v299 = vpack.c.bf16 %v295, %v295
  %v300 = vpack.c.bf16 %v296, %v296
  %v301 = vpack.c.bf16 %v297, %v297
  %v302 = vpack.c.bf16 %v298, %v298
  %v307 = vunpack.c.l.b16 %v299
  %v308 = vunpack.c.l.b16 %v300
  %v309 = vunpack.c.l.b16 %v301
  %v310 = vunpack.c.l.b16 %v302
  %v311 = vpack.c.b16 %v308, %v307
  %v312 = vpack.c.b16 %v310, %v309
  %v313 = vrot.slane %v311, 6
  %v314 = vrot.slane %v312, 6
  %317 = vst [vmem:[#allocation2 + $0x20] sm:$0xcc] %v313
  %318 = vst [vmem:[#allocation2 + $0x28] sm:$0xcc] %v314
  %319 = vrot.lane.b32.xlu0 %v72, 113
  %v320 = vpop.permute.xlu0 %319
  %321 = vrot.lane.b32.xlu0 %v76, 113
  %v322 = vpop.permute.xlu0 %321
  %323 = vrot.lane.b32.xlu0 %v73, 113
  %v324 = vpop.permute.xlu0 %323
  %325 = vrot.lane.b32.xlu0 %v77, 113
  %v326 = vpop.permute.xlu0 %325
  %vm327 = vcmp.lt.s32.totalorder %v28, 113
  %v328 = vsel %vm327, %v324, %v326
  %v329 = vsel %vm327, %v322, %v324
  %v330 = vsel %vm327, %v320, %v322
  %v331 = vsel %vm327, %v326, %v320
  %v332 = vsel %vm64, 1, 0
  %v333 = vsel %vm65, 1, 0
  %v334 = vsel %vm66, 1, 0
  %v335 = vsel %vm67, 1, 0
  %vm336 = vcmp.eq.s32.totalorder %v332, 1
  %vm337 = vcmp.eq.s32.totalorder %v333, 1
  %vm338 = vcmp.eq.s32.totalorder %v334, 1
  %vm339 = vcmp.eq.s32.totalorder %v335, 1
  %v340 = vsel %vm336, %v330, 0.0
  %v341 = vsel %vm337, %v329, 0.0
  %v342 = vsel %vm338, %v328, 0.0
  %v343 = vsel %vm339, %v331, 0.0
  %v344 = vpack.c.bf16 %v340, %v340
  %v345 = vpack.c.bf16 %v341, %v341
  %v346 = vpack.c.bf16 %v342, %v342
  %v347 = vpack.c.bf16 %v343, %v343
  %v352 = vunpack.c.l.b16 %v344
  %v353 = vunpack.c.l.b16 %v345
  %v354 = vunpack.c.l.b16 %v346
  %v355 = vunpack.c.l.b16 %v347
  %v356 = vpack.c.b16 %v353, %v352
  %v357 = vpack.c.b16 %v355, %v354
  %360 = vst [vmem:[#allocation2 + $0x30] sm:$0x33] %v356
  %361 = vst [vmem:[#allocation2 + $0x38] sm:$0x33] %v357
  %362 = vrot.lane.b32.xlu0 %v72, 112
  %v363 = vpop.permute.xlu0 %362
  %364 = vrot.lane.b32.xlu0 %v76, 112
  %v365 = vpop.permute.xlu0 %364
  %366 = vrot.lane.b32.xlu0 %v73, 112
  %v367 = vpop.permute.xlu0 %366
  %368 = vrot.lane.b32.xlu0 %v77, 112
  %v369 = vpop.permute.xlu0 %368
  %vm370 = vcmp.lt.s32.totalorder %v28, 112
  %v371 = vsel %vm370, %v367, %v369
  %v372 = vsel %vm370, %v365, %v367
  %v373 = vsel %vm370, %v363, %v365
  %v374 = vsel %vm370, %v369, %v363
  %v375 = vsel %vm60, 1, 0
  %v376 = vsel %vm61, 1, 0
  %v377 = vsel %vm62, 1, 0
  %v378 = vsel %vm63, 1, 0
  %vm379 = vcmp.eq.s32.totalorder %v375, 1
  %vm380 = vcmp.eq.s32.totalorder %v376, 1
  %vm381 = vcmp.eq.s32.totalorder %v377, 1
  %vm382 = vcmp.eq.s32.totalorder %v378, 1
  %v383 = vsel %vm379, %v373, 0.0
  %v384 = vsel %vm380, %v372, 0.0
  %v385 = vsel %vm381, %v371, 0.0
  %v386 = vsel %vm382, %v374, 0.0
  %v387 = vpack.c.bf16 %v383, %v383
  %v388 = vpack.c.bf16 %v384, %v384
  %v389 = vpack.c.bf16 %v385, %v385
  %v390 = vpack.c.bf16 %v386, %v386
  %v395 = vunpack.c.l.b16 %v387
  %v396 = vunpack.c.l.b16 %v388
  %v397 = vunpack.c.l.b16 %v389
  %v398 = vunpack.c.l.b16 %v390
  %v399 = vpack.c.b16 %v396, %v395
  %v400 = vpack.c.b16 %v398, %v397
  %v401 = vrot.slane %v399, 6
  %v402 = vrot.slane %v400, 6
  %405 = vst [vmem:[#allocation2 + $0x30] sm:$0xcc] %v401
  %406 = vst [vmem:[#allocation2 + $0x38] sm:$0xcc] %v402
  %407 = vrot.lane.b32.xlu0 %v72, 111
  %v408 = vpop.permute.xlu0 %407
  %409 = vrot.lane.b32.xlu0 %v76, 111
  %v410 = vpop.permute.xlu0 %409
  %411 = vrot.lane.b32.xlu0 %v73, 111
  %v412 = vpop.permute.xlu0 %411
  %413 = vrot.lane.b32.xlu0 %v77, 111
  %v414 = vpop.permute.xlu0 %413
  %vm415 = vcmp.lt.s32.totalorder %v28, 111
  %v416 = vsel %vm415, %v412, %v414
  %v417 = vsel %vm415, %v410, %v412
  %v418 = vsel %vm415, %v408, %v410
  %v419 = vsel %vm415, %v414, %v408
  %v420 = vsel %vm68, 1, 0
  %v421 = vsel %vm69, 1, 0
  %v422 = vsel %vm70, 1, 0
  %v423 = vsel %vm71, 1, 0
  %vm424 = vcmp.eq.s32.totalorder %v420, 1
  %vm425 = vcmp.eq.s32.totalorder %v421, 1
  %vm426 = vcmp.eq.s32.totalorder %v422, 1
  %vm427 = vcmp.eq.s32.totalorder %v423, 1
  %v428 = vsel %vm424, %v418, 0.0
  %v429 = vsel %vm425, %v417, 0.0
  %v430 = vsel %vm426, %v416, 0.0
  %v431 = vsel %vm427, %v419, 0.0
  %v432 = vpack.c.bf16 %v428, %v428
  %v433 = vpack.c.bf16 %v429, %v429
  %v434 = vpack.c.bf16 %v430, %v430
  %v435 = vpack.c.bf16 %v431, %v431
  %v440 = vunpack.c.l.b16 %v432
  %v441 = vunpack.c.l.b16 %v433
  %v442 = vunpack.c.l.b16 %v434
  %v443 = vunpack.c.l.b16 %v435
  %v444 = vpack.c.b16 %v441, %v440
  %v445 = vpack.c.b16 %v443, %v442
  %448 = vst [vmem:[#allocation2 + $0x40] sm:$0x33] %v444
  %449 = vst [vmem:[#allocation2 + $0x48] sm:$0x33] %v445
  %v450 = vld [vmem:[%s1] sm:$0xf]
  %v451 = vld [vmem:[%s1 + $0x4] sm:$0xf]
  %v452 = vld [vmem:[%s1 + $0x8] sm:$0xf]
  %v453 = vld [vmem:[%s1 + $0xc] sm:$0xf]
  %v454 = vld [vmem:[#allocation2] sm:$0xff]
  %v455 = vld [vmem:[#allocation2 + $0x8] sm:$0xff]
  %v456 = vld [vmem:[#allocation2 + $0x10] sm:$0xff]
  %v457 = vld [vmem:[#allocation2 + $0x18] sm:$0xff]
  %v458 = vld [vmem:[#allocation2 + $0x20] sm:$0xff]
  %v459 = vld [vmem:[#allocation2 + $0x28] sm:$0xff]
  %v460 = vld [vmem:[#allocation2 + $0x30] sm:$0xff]
  %v461 = vld [vmem:[#allocation2 + $0x38] sm:$0xff]
  %v462 = vld [vmem:[#allocation2 + $0x40] sm:$0x33]
  %v463 = vld [vmem:[#allocation2 + $0x48] sm:$0x33]
  %v464 = vld [vmem:[%s2] sm:$0xff]
  %v465 = vld [vmem:[%s2 + $0x8] sm:$0xff]
  %v466 = vld [vmem:[%s2 + $0x10] sm:$0xff]
  %v467 = vld [vmem:[%s2 + $0x18] sm:$0xff]
  %469 = vset.pattern.permute.xlu0 0
  %470 = vperm.xlu0 %469, %v464
  %v471 = vpop.permute.xlu0 %470
  %474 = vset.pattern.permute.xlu0 0
  %475 = vperm.xlu0 %474, %v465
  %v476 = vpop.permute.xlu0 %475
  %479 = vset.pattern.permute.xlu0 0
  %480 = vperm.xlu0 %479, %v466
  %v481 = vpop.permute.xlu0 %480
  %484 = vset.pattern.permute.xlu0 0
  %485 = vperm.xlu0 %484, %v467
  %v486 = vpop.permute.xlu0 %485
  %v492 = vunpack.c.l.b16 %v450
  %v493 = vunpack.c.l.b16 %v451
  %v494 = vunpack.c.l.b16 %v452
  %v495 = vunpack.c.l.b16 %v453
  %v496 = vpack.c.b16 %v493, %v492
  %v497 = vpack.c.b16 %v495, %v494
  %v508 = vunpack.c.l.b16 %v454
  %v509 = vunpack.c.h.b16 %v454
  %v510 = vunpack.c.l.b16 %v455
  %v511 = vunpack.c.h.b16 %v455
  %v512 = vunpack.c.l.b16 %v456
  %v513 = vunpack.c.h.b16 %v456
  %v514 = vunpack.c.l.b16 %v457
  %v515 = vunpack.c.h.b16 %v457
  %v516 = vunpack.c.l.b16 %v458
  %v517 = vunpack.c.h.b16 %v458
  %v518 = vunpack.c.l.b16 %v459
  %v519 = vunpack.c.h.b16 %v459
  %v520 = vunpack.c.l.b16 %v460
  %v521 = vunpack.c.h.b16 %v460
  %v522 = vunpack.c.l.b16 %v461
  %v523 = vunpack.c.h.b16 %v461
  %v524 = vunpack.c.l.b16 %v462
  %v525 = vunpack.c.h.b16 %v462
  %v526 = vunpack.c.l.b16 %v463
  %v527 = vunpack.c.h.b16 %v463
  %v528 = vpack.c.b16 %v512, %v508
  %v529 = vpack.c.b16 %v513, %v509
  %v530 = vpack.c.b16 %v514, %v510
  %v531 = vpack.c.b16 %v515, %v511
  %v532 = vpack.c.b16 %v520, %v516
  %v533 = vpack.c.b16 %v521, %v517
  %v534 = vpack.c.b16 %v522, %v518
  %v535 = vpack.c.b16 %v523, %v519
  %v536 = vpack.c.b16 %v524, %v524
  %v537 = vpack.c.b16 %v525, %v525
  %v538 = vpack.c.b16 %v526, %v526
  %v539 = vpack.c.b16 %v527, %v527
  %vm548 = vcmask 293888
  %v550 = vsel %vm548, %v496, 0
  %v553 = vsel %vm548, %v497, 0
  %vm555 = vcmask 1041408
  %v557 = vsel %vm555, %v536, 0
  %v560 = vsel %vm555, %v537, 0
  %v563 = vsel %vm555, %v538, 0
  %v566 = vsel %vm555, %v539, 0
  %568 = vmatprep.subr.bf16.mxu0 0
  %569 = vmatpush1.bf16.msra.mxu0 0
  %570 = vmatprep.subr.bf16.mxu0 0
  %571 = vmatpush1.bf16.msra.mxu0 0
  %572 = vmatprep.subr.bf16.mxu0 0
  %573 = vmatpush1.bf16.msra.mxu0 0
  %574 = vmatprep.subr.bf16.mxu0 0
  %575 = vmatpush1.bf16.msra.mxu0 0
  %576 = vmatprep.subr.bf16.mxu0 0
  %577 = vmatpush1.bf16.msra.mxu0 0
  %578 = vmatprep.subr.bf16.mxu0 %v560
  %579 = vmatpush1.bf16.msra.mxu0 %v557
  %580 = vmatprep.subr.bf16.mxu0 %v533
  %581 = vmatpush1.bf16.msra.mxu0 %v532
  %582 = vmatprep.subr.bf16.mxu0 %v529
  %583 = vmatpush1.bf16.msra.mxu0 %v528
  %584 = vmatprep.subr.bf16.mxu0 0
  %585 = vmatpush2.bf16.msra.mxu0 0
  %586 = vmatprep.subr.bf16.mxu0 0
  %587 = vmatpush2.bf16.msra.mxu0 0
  %588 = vmatprep.subr.bf16.mxu0 0
  %589 = vmatpush2.bf16.msra.mxu0 0
  %590 = vmatprep.subr.bf16.mxu0 0
  %591 = vmatpush2.bf16.msra.mxu0 0
  %592 = vmatprep.subr.bf16.mxu0 0
  %593 = vmatpush2.bf16.msra.mxu0 0
  %594 = vmatprep.subr.bf16.mxu0 0
  %595 = vmatpush2.bf16.msra.mxu0 0
  %596 = vmatprep.subr.bf16.mxu0 0
  %597 = vmatpush2.bf16.msra.mxu0 0
  %598 = vmatprep.subr.bf16.mxu0 0
  %599 = vmatpush2.bf16.msra.mxu0 0
  %600 = vmatprep.mubr.bf16.mxu0 0
  %601 = vmatmul.mubr.bf16.gmra.mxu0 %v550
  %v602 = vpop.f32.mrf.mxu0
  %v603 = vadd.f32 %v471, %v602
  %v604 = vpop.f32.mrf.mxu0
  %v605 = vadd.f32 %v471, %v604
  %v606 = vpop.f32.mrf.mxu0
  %v607 = vadd.f32 %v476, %v606
  %v608 = vpop.f32.mrf.mxu0
  %v609 = vadd.f32 %v476, %v608
  %610 = vmatprep.mubr.bf16.mxu0 0
  %611 = vmatmul.mubr.bf16.gmra.mxu0 %v553
  %v612 = vpop.f32.mrf.mxu0
  %v613 = vadd.f32 %v481, %v612
  %v614 = vpop.f32.mrf.mxu0
  %v615 = vadd.f32 %v481, %v614
  %v616 = vpop.f32.mrf.mxu0
  %v617 = vadd.f32 %v486, %v616
  %v618 = vpop.f32.mrf.mxu0
  %v619 = vadd.f32 %v486, %v618
  %620 = vdwg.mxu0
  %621 = vmatprep.subr.bf16.mxu0 0
  %622 = vmatpush1.bf16.msra.mxu0 0
  %623 = vmatprep.subr.bf16.mxu0 0
  %624 = vmatpush1.bf16.msra.mxu0 0
  %625 = vmatprep.subr.bf16.mxu0 0
  %626 = vmatpush1.bf16.msra.mxu0 0
  %627 = vmatprep.subr.bf16.mxu0 0
  %628 = vmatpush1.bf16.msra.mxu0 0
  %629 = vmatprep.subr.bf16.mxu0 0
  %630 = vmatpush1.bf16.msra.mxu0 0
  %631 = vmatprep.subr.bf16.mxu0 %v566
  %632 = vmatpush1.bf16.msra.mxu0 %v563
  %633 = vmatprep.subr.bf16.mxu0 %v535
  %634 = vmatpush1.bf16.msra.mxu0 %v534
  %635 = vmatprep.subr.bf16.mxu0 %v531
  %636 = vmatpush1.bf16.msra.mxu0 %v530
  %637 = vmatprep.subr.bf16.mxu0 0
  %638 = vmatpush2.bf16.msra.mxu0 0
  %639 = vmatprep.subr.bf16.mxu0 0
  %640 = vmatpush2.bf16.msra.mxu0 0
  %641 = vmatprep.subr.bf16.mxu0 0
  %642 = vmatpush2.bf16.msra.mxu0 0
  %643 = vmatprep.subr.bf16.mxu0 0
  %644 = vmatpush2.bf16.msra.mxu0 0
  %645 = vmatprep.subr.bf16.mxu0 0
  %646 = vmatpush2.bf16.msra.mxu0 0
  %647 = vmatprep.subr.bf16.mxu0 0
  %648 = vmatpush2.bf16.msra.mxu0 0
  %649 = vmatprep.subr.bf16.mxu0 0
  %650 = vmatpush2.bf16.msra.mxu0 0
  %651 = vmatprep.subr.bf16.mxu0 0
  %652 = vmatpush2.bf16.msra.mxu0 0
  %653 = vmatprep.mubr.bf16.mxu0 0
  %654 = vmatmul.mubr.bf16.gmra.mxu0 %v550
  %v655 = vpop.f32.mrf.mxu0
  %v656 = vadd.f32 %v471, %v655
  %v657 = vpop.f32.mrf.mxu0
  %v658 = vadd.f32 %v471, %v657
  %v659 = vpop.f32.mrf.mxu0
  %v660 = vadd.f32 %v476, %v659
  %v661 = vpop.f32.mrf.mxu0
  %v662 = vadd.f32 %v476, %v661
  %663 = vmatprep.mubr.bf16.mxu0 0
  %664 = vmatmul.mubr.bf16.gmra.mxu0 %v553
  %v665 = vpop.f32.mrf.mxu0
  %v666 = vadd.f32 %v481, %v665
  %v667 = vpop.f32.mrf.mxu0
  %v668 = vadd.f32 %v481, %v667
  %v669 = vpop.f32.mrf.mxu0
  %v670 = vadd.f32 %v486, %v669
  %v671 = vpop.f32.mrf.mxu0
  %v672 = vadd.f32 %v486, %v671
  %673 = vdwg.mxu0
  %v674 = vmax.f32 %v603, 0.0
  %v675 = vmax.f32 %v605, 0.0
  %v676 = vmax.f32 %v656, 0.0
  %v677 = vmax.f32 %v658, 0.0
  %v678 = vmax.f32 %v607, 0.0
  %v679 = vmax.f32 %v609, 0.0
  %v680 = vmax.f32 %v660, 0.0
  %v681 = vmax.f32 %v662, 0.0
  %v682 = vmax.f32 %v613, 0.0
  %v683 = vmax.f32 %v615, 0.0
  %v684 = vmax.f32 %v666, 0.0
  %v685 = vmax.f32 %v668, 0.0
  %v686 = vmax.f32 %v617, 0.0
  %v687 = vmax.f32 %v619, 0.0
  %v688 = vmax.f32 %v670, 0.0
  %v689 = vmax.f32 %v672, 0.0
  %v690 = vld [vmem:[%s3] sm:$0xf]
  %v691 = vld [vmem:[%s3 + $0x4] sm:$0xf]
  %v692 = vld [vmem:[%s3 + $0x8] sm:$0xf]
  %v693 = vld [vmem:[%s3 + $0xc] sm:$0xf]
  %v694 = vpack.c.bf16 %v678, %v674
  %v695 = vpack.c.bf16 %v679, %v675
  %v696 = vpack.c.bf16 %v680, %v676
  %v697 = vpack.c.bf16 %v681, %v677
  %v698 = vpack.c.bf16 %v686, %v682
  %v699 = vpack.c.bf16 %v687, %v683
  %v700 = vpack.c.bf16 %v688, %v684
  %v701 = vpack.c.bf16 %v689, %v685
  %v702 = vld [vmem:[%s4] sm:$0xff]
  %v703 = vld [vmem:[%s4 + $0x8] sm:$0xff]
  %v704 = vld [vmem:[%s4 + $0x10] sm:$0xff]
  %v705 = vld [vmem:[%s4 + $0x18] sm:$0xff]
  %707 = vset.pattern.permute.xlu0 0
  %708 = vperm.xlu0 %707, %v702
  %v709 = vpop.permute.xlu0 %708
  %712 = vset.pattern.permute.xlu0 0
  %713 = vperm.xlu0 %712, %v703
  %v714 = vpop.permute.xlu0 %713
  %717 = vset.pattern.permute.xlu0 0
  %718 = vperm.xlu0 %717, %v704
  %v719 = vpop.permute.xlu0 %718
  %722 = vset.pattern.permute.xlu0 0
  %723 = vperm.xlu0 %722, %v705
  %v724 = vpop.permute.xlu0 %723
  %v730 = vunpack.c.l.b16 %v690
  %v731 = vunpack.c.l.b16 %v691
  %v732 = vunpack.c.l.b16 %v692
  %v733 = vunpack.c.l.b16 %v693
  %v734 = vpack.c.b16 %v731, %v730
  %v735 = vpack.c.b16 %v733, %v732
  %vm736 = vcmask 261120
  %v738 = vsel %vm736, %v734, 0
  %v741 = vsel %vm736, %v735, 0
  %743 = vmatprep.subr.bf16.mxu0 0
  %744 = vmatpush1.bf16.msra.mxu0 0
  %745 = vmatprep.subr.bf16.mxu0 0
  %746 = vmatpush1.bf16.msra.mxu0 0
  %747 = vmatprep.subr.bf16.mxu0 0
  %748 = vmatpush1.bf16.msra.mxu0 0
  %749 = vmatprep.subr.bf16.mxu0 0
  %750 = vmatpush1.bf16.msra.mxu0 0
  %751 = vmatprep.subr.bf16.mxu0 0
  %752 = vmatpush1.bf16.msra.mxu0 0
  %753 = vmatprep.subr.bf16.mxu0 0
  %754 = vmatpush1.bf16.msra.mxu0 0
  %755 = vmatprep.subr.bf16.mxu0 %v699
  %756 = vmatpush1.bf16.msra.mxu0 %v698
  %757 = vmatprep.subr.bf16.mxu0 %v695
  %758 = vmatpush1.bf16.msra.mxu0 %v694
  %759 = vmatprep.subr.bf16.mxu0 0
  %760 = vmatpush2.bf16.msra.mxu0 0
  %761 = vmatprep.subr.bf16.mxu0 0
  %762 = vmatpush2.bf16.msra.mxu0 0
  %763 = vmatprep.subr.bf16.mxu0 0
  %764 = vmatpush2.bf16.msra.mxu0 0
  %765 = vmatprep.subr.bf16.mxu0 0
  %766 = vmatpush2.bf16.msra.mxu0 0
  %767 = vmatprep.subr.bf16.mxu0 0
  %768 = vmatpush2.bf16.msra.mxu0 0
  %769 = vmatprep.subr.bf16.mxu0 0
  %770 = vmatpush2.bf16.msra.mxu0 0
  %771 = vmatprep.subr.bf16.mxu0 0
  %772 = vmatpush2.bf16.msra.mxu0 0
  %773 = vmatprep.subr.bf16.mxu0 0
  %774 = vmatpush2.bf16.msra.mxu0 0
  %775 = vmatprep.mubr.bf16.mxu0 0
  %776 = vmatmul.mubr.bf16.gmra.mxu0 %v738
  %v777 = vpop.f32.mrf.mxu0
  %v778 = vadd.f32 %v709, %v777
  %v779 = vpop.f32.mrf.mxu0
  %v780 = vadd.f32 %v709, %v779
  %v781 = vpop.f32.mrf.mxu0
  %v782 = vadd.f32 %v714, %v781
  %v783 = vpop.f32.mrf.mxu0
  %v784 = vadd.f32 %v714, %v783
  %785 = vmatprep.mubr.bf16.mxu0 0
  %786 = vmatmul.mubr.bf16.gmra.mxu0 %v741
  %v787 = vpop.f32.mrf.mxu0
  %v788 = vadd.f32 %v719, %v787
  %v789 = vpop.f32.mrf.mxu0
  %v790 = vadd.f32 %v719, %v789
  %v791 = vpop.f32.mrf.mxu0
  %v792 = vadd.f32 %v724, %v791
  %v793 = vpop.f32.mrf.mxu0
  %v794 = vadd.f32 %v724, %v793
  %795 = vdwg.mxu0
  %796 = vmatprep.subr.bf16.mxu0 0
  %797 = vmatpush1.bf16.msra.mxu0 0
  %798 = vmatprep.subr.bf16.mxu0 0
  %799 = vmatpush1.bf16.msra.mxu0 0
  %800 = vmatprep.subr.bf16.mxu0 0
  %801 = vmatpush1.bf16.msra.mxu0 0
  %802 = vmatprep.subr.bf16.mxu0 0
  %803 = vmatpush1.bf16.msra.mxu0 0
  %804 = vmatprep.subr.bf16.mxu0 0
  %805 = vmatpush1.bf16.msra.mxu0 0
  %806 = vmatprep.subr.bf16.mxu0 0
  %807 = vmatpush1.bf16.msra.mxu0 0
  %808 = vmatprep.subr.bf16.mxu0 %v701
  %809 = vmatpush1.bf16.msra.mxu0 %v700
  %810 = vmatprep.subr.bf16.mxu0 %v697
  %811 = vmatpush1.bf16.msra.mxu0 %v696
  %812 = vmatprep.subr.bf16.mxu0 0
  %813 = vmatpush2.bf16.msra.mxu0 0
  %814 = vmatprep.subr.bf16.mxu0 0
  %815 = vmatpush2.bf16.msra.mxu0 0
  %816 = vmatprep.subr.bf16.mxu0 0
  %817 = vmatpush2.bf16.msra.mxu0 0
  %818 = vmatprep.subr.bf16.mxu0 0
  %819 = vmatpush2.bf16.msra.mxu0 0
  %820 = vmatprep.subr.bf16.mxu0 0
  %821 = vmatpush2.bf16.msra.mxu0 0
  %822 = vmatprep.subr.bf16.mxu0 0
  %823 = vmatpush2.bf16.msra.mxu0 0
  %824 = vmatprep.subr.bf16.mxu0 0
  %825 = vmatpush2.bf16.msra.mxu0 0
  %826 = vmatprep.subr.bf16.mxu0 0
  %827 = vmatpush2.bf16.msra.mxu0 0
  %828 = vmatprep.mubr.bf16.mxu0 0
  %829 = vmatmul.mubr.bf16.gmra.mxu0 %v738
  %v830 = vpop.f32.mrf.mxu0
  %v831 = vadd.f32 %v709, %v830
  %v832 = vpop.f32.mrf.mxu0
  %v833 = vadd.f32 %v709, %v832
  %v834 = vpop.f32.mrf.mxu0
  %v835 = vadd.f32 %v714, %v834
  %v836 = vpop.f32.mrf.mxu0
  %v837 = vadd.f32 %v714, %v836
  %838 = vmatprep.mubr.bf16.mxu0 0
  %839 = vmatmul.mubr.bf16.gmra.mxu0 %v741
  %v840 = vpop.f32.mrf.mxu0
  %v841 = vadd.f32 %v719, %v840
  %v842 = vpop.f32.mrf.mxu0
  %v843 = vadd.f32 %v719, %v842
  %v844 = vpop.f32.mrf.mxu0
  %v845 = vadd.f32 %v724, %v844
  %v846 = vpop.f32.mrf.mxu0
  %v847 = vadd.f32 %v724, %v846
  %848 = vdwg.mxu0
  %v849 = vmax.f32 %v778, 0.0
  %v850 = vmax.f32 %v780, 0.0
  %v851 = vmax.f32 %v831, 0.0
  %v852 = vmax.f32 %v833, 0.0
  %v853 = vmax.f32 %v782, 0.0
  %v854 = vmax.f32 %v784, 0.0
  %v855 = vmax.f32 %v835, 0.0
  %v856 = vmax.f32 %v837, 0.0
  %v857 = vmax.f32 %v788, 0.0
  %v858 = vmax.f32 %v790, 0.0
  %v859 = vmax.f32 %v841, 0.0
  %v860 = vmax.f32 %v843, 0.0
  %v861 = vmax.f32 %v792, 0.0
  %v862 = vmax.f32 %v794, 0.0
  %v863 = vmax.f32 %v845, 0.0
  %v864 = vmax.f32 %v847, 0.0
  %865 = vrot.lane.b32.xlu0 %v849, 17
  %v866 = vpop.permute.xlu0 %865
  %867 = vrot.lane.b32.xlu0 %v853, 17
  %v868 = vpop.permute.xlu0 %867
  %869 = vrot.lane.b32.xlu0 %v857, 17
  %v870 = vpop.permute.xlu0 %869
  %871 = vrot.lane.b32.xlu0 %v861, 17
  %v872 = vpop.permute.xlu0 %871
  %873 = vrot.lane.b32.xlu0 %v850, 17
  %v874 = vpop.permute.xlu0 %873
  %875 = vrot.lane.b32.xlu0 %v854, 17
  %v876 = vpop.permute.xlu0 %875
  %877 = vrot.lane.b32.xlu0 %v858, 17
  %v878 = vpop.permute.xlu0 %877
  %879 = vrot.lane.b32.xlu0 %v862, 17
  %v880 = vpop.permute.xlu0 %879
  %881 = vrot.lane.b32.xlu0 %v851, 17
  %v882 = vpop.permute.xlu0 %881
  %883 = vrot.lane.b32.xlu0 %v855, 17
  %v884 = vpop.permute.xlu0 %883
  %885 = vrot.lane.b32.xlu0 %v859, 17
  %v886 = vpop.permute.xlu0 %885
  %887 = vrot.lane.b32.xlu0 %v863, 17
  %v888 = vpop.permute.xlu0 %887
  %889 = vrot.lane.b32.xlu0 %v852, 17
  %v890 = vpop.permute.xlu0 %889
  %891 = vrot.lane.b32.xlu0 %v856, 17
  %v892 = vpop.permute.xlu0 %891
  %893 = vrot.lane.b32.xlu0 %v860, 17
  %v894 = vpop.permute.xlu0 %893
  %895 = vrot.lane.b32.xlu0 %v864, 17
  %v896 = vpop.permute.xlu0 %895
  %v897 = vsel %vm88, %v882, %v890
  %v898 = vsel %vm88, %v884, %v892
  %v899 = vsel %vm88, %v886, %v894
  %v900 = vsel %vm88, %v888, %v896
  %v901 = vsel %vm88, %v874, %v882
  %v902 = vsel %vm88, %v876, %v884
  %v903 = vsel %vm88, %v878, %v886
  %v904 = vsel %vm88, %v880, %v888
  %v905 = vsel %vm88, %v866, %v874
  %v906 = vsel %vm88, %v868, %v876
  %v907 = vsel %vm88, %v870, %v878
  %v908 = vsel %vm88, %v872, %v880
  %v909 = vsel %vm88, %v890, %v866
  %v910 = vsel %vm88, %v892, %v868
  %v911 = vsel %vm88, %v894, %v870
  %v912 = vsel %vm88, %v896, %v872
  %v913 = vsel %vm97, %v909, 0.0
  %v914 = vsel %vm98, %v905, 0.0
  %v915 = vsel %vm99, %v901, 0.0
  %v916 = vsel %vm100, %v897, 0.0
  %v917 = vsel %vm97, %v910, 0.0
  %v918 = vsel %vm98, %v906, 0.0
  %v919 = vsel %vm99, %v902, 0.0
  %v920 = vsel %vm100, %v898, 0.0
  %v921 = vsel %vm97, %v911, 0.0
  %v922 = vsel %vm98, %v907, 0.0
  %v923 = vsel %vm99, %v903, 0.0
  %v924 = vsel %vm100, %v899, 0.0
  %v925 = vsel %vm97, %v912, 0.0
  %v926 = vsel %vm98, %v908, 0.0
  %v927 = vsel %vm99, %v904, 0.0
  %v928 = vsel %vm100, %v900, 0.0
  %v929 = vpack.c.bf16 %v917, %v913
  %v930 = vpack.c.bf16 %v918, %v914
  %v931 = vpack.c.bf16 %v919, %v915
  %v932 = vpack.c.bf16 %v920, %v916
  %v933 = vpack.c.bf16 %v925, %v921
  %v934 = vpack.c.bf16 %v926, %v922
  %v935 = vpack.c.bf16 %v927, %v923
  %v936 = vpack.c.bf16 %v928, %v924
  %v945 = vunpack.c.l.b16 %v929
  %v946 = vunpack.c.l.b16 %v930
  %v947 = vunpack.c.l.b16 %v931
  %v948 = vunpack.c.l.b16 %v932
  %v949 = vunpack.c.h.b16 %v929
  %v950 = vunpack.c.h.b16 %v930
  %v951 = vunpack.c.h.b16 %v931
  %v952 = vunpack.c.h.b16 %v932
  %v953 = vunpack.c.l.b16 %v933
  %v954 = vunpack.c.l.b16 %v934
  %v955 = vunpack.c.l.b16 %v935
  %v956 = vunpack.c.l.b16 %v936
  %v957 = vunpack.c.h.b16 %v933
  %v958 = vunpack.c.h.b16 %v934
  %v959 = vunpack.c.h.b16 %v935
  %v960 = vunpack.c.h.b16 %v936
  %v961 = vpack.c.b16 %v946, %v945
  %v962 = vpack.c.b16 %v948, %v947
  %v963 = vpack.c.b16 %v950, %v949
  %v964 = vpack.c.b16 %v952, %v951
  %v965 = vpack.c.b16 %v954, %v953
  %v966 = vpack.c.b16 %v956, %v955
  %v967 = vpack.c.b16 %v958, %v957
  %v968 = vpack.c.b16 %v960, %v959
  %977 = vst [vmem:[#allocation3] sm:$0xff] %v961
  %978 = vst [vmem:[#allocation3 + $0x8] sm:$0xff] %v962
  %979 = vst [vmem:[#allocation3 + $0x10] sm:$0xff] %v963
  %980 = vst [vmem:[#allocation3 + $0x18] sm:$0xff] %v964
  %981 = vst [vmem:[#allocation3 + $0x20] sm:$0xff] %v965
  %982 = vst [vmem:[#allocation3 + $0x28] sm:$0xff] %v966
  %983 = vst [vmem:[#allocation3 + $0x30] sm:$0xff] %v967
  %984 = vst [vmem:[#allocation3 + $0x38] sm:$0xff] %v968
  %985 = vrot.lane.b32.xlu0 %v849, 16
  %v986 = vpop.permute.xlu0 %985
  %987 = vrot.lane.b32.xlu0 %v853, 16
  %v988 = vpop.permute.xlu0 %987
  %989 = vrot.lane.b32.xlu0 %v857, 16
  %v990 = vpop.permute.xlu0 %989
  %991 = vrot.lane.b32.xlu0 %v861, 16
  %v992 = vpop.permute.xlu0 %991
  %993 = vrot.lane.b32.xlu0 %v850, 16
  %v994 = vpop.permute.xlu0 %993
  %995 = vrot.lane.b32.xlu0 %v854, 16
  %v996 = vpop.permute.xlu0 %995
  %997 = vrot.lane.b32.xlu0 %v858, 16
  %v998 = vpop.permute.xlu0 %997
  %999 = vrot.lane.b32.xlu0 %v862, 16
  %v1000 = vpop.permute.xlu0 %999
  %1001 = vrot.lane.b32.xlu0 %v851, 16
  %v1002 = vpop.permute.xlu0 %1001
  %1003 = vrot.lane.b32.xlu0 %v855, 16
  %v1004 = vpop.permute.xlu0 %1003
  %1005 = vrot.lane.b32.xlu0 %v859, 16
  %v1006 = vpop.permute.xlu0 %1005
  %1007 = vrot.lane.b32.xlu0 %v863, 16
  %v1008 = vpop.permute.xlu0 %1007
  %1009 = vrot.lane.b32.xlu0 %v852, 16
  %v1010 = vpop.permute.xlu0 %1009
  %1011 = vrot.lane.b32.xlu0 %v856, 16
  %v1012 = vpop.permute.xlu0 %1011
  %1013 = vrot.lane.b32.xlu0 %v860, 16
  %v1014 = vpop.permute.xlu0 %1013
  %1015 = vrot.lane.b32.xlu0 %v864, 16
  %v1016 = vpop.permute.xlu0 %1015
  %v1017 = vsel %vm131, %v1002, %v1010
  %v1018 = vsel %vm131, %v1004, %v1012
  %v1019 = vsel %vm131, %v1006, %v1014
  %v1020 = vsel %vm131, %v1008, %v1016
  %v1021 = vsel %vm131, %v994, %v1002
  %v1022 = vsel %vm131, %v996, %v1004
  %v1023 = vsel %vm131, %v998, %v1006
  %v1024 = vsel %vm131, %v1000, %v1008
  %v1025 = vsel %vm131, %v986, %v994
  %v1026 = vsel %vm131, %v988, %v996
  %v1027 = vsel %vm131, %v990, %v998
  %v1028 = vsel %vm131, %v992, %v1000
  %v1029 = vsel %vm131, %v1010, %v986
  %v1030 = vsel %vm131, %v1012, %v988
  %v1031 = vsel %vm131, %v1014, %v990
  %v1032 = vsel %vm131, %v1016, %v992
  %v1033 = vsel %vm140, %v1029, 0.0
  %v1034 = vsel %vm141, %v1025, 0.0
  %v1035 = vsel %vm142, %v1021, 0.0
  %v1036 = vsel %vm143, %v1017, 0.0
  %v1037 = vsel %vm140, %v1030, 0.0
  %v1038 = vsel %vm141, %v1026, 0.0
  %v1039 = vsel %vm142, %v1022, 0.0
  %v1040 = vsel %vm143, %v1018, 0.0
  %v1041 = vsel %vm140, %v1031, 0.0
  %v1042 = vsel %vm141, %v1027, 0.0
  %v1043 = vsel %vm142, %v1023, 0.0
  %v1044 = vsel %vm143, %v1019, 0.0
  %v1045 = vsel %vm140, %v1032, 0.0
  %v1046 = vsel %vm141, %v1028, 0.0
  %v1047 = vsel %vm142, %v1024, 0.0
  %v1048 = vsel %vm143, %v1020, 0.0
  %v1049 = vpack.c.bf16 %v1037, %v1033
  %v1050 = vpack.c.bf16 %v1038, %v1034
  %v1051 = vpack.c.bf16 %v1039, %v1035
  %v1052 = vpack.c.bf16 %v1040, %v1036
  %v1053 = vpack.c.bf16 %v1045, %v1041
  %v1054 = vpack.c.bf16 %v1046, %v1042
  %v1055 = vpack.c.bf16 %v1047, %v1043
  %v1056 = vpack.c.bf16 %v1048, %v1044
  %v1065 = vunpack.c.l.b16 %v1049
  %v1066 = vunpack.c.l.b16 %v1050
  %v1067 = vunpack.c.l.b16 %v1051
  %v1068 = vunpack.c.l.b16 %v1052
  %v1069 = vunpack.c.h.b16 %v1049
  %v1070 = vunpack.c.h.b16 %v1050
  %v1071 = vunpack.c.h.b16 %v1051
  %v1072 = vunpack.c.h.b16 %v1052
  %v1073 = vunpack.c.l.b16 %v1053
  %v1074 = vunpack.c.l.b16 %v1054
  %v1075 = vunpack.c.l.b16 %v1055
  %v1076 = vunpack.c.l.b16 %v1056
  %v1077 = vunpack.c.h.b16 %v1053
  %v1078 = vunpack.c.h.b16 %v1054
  %v1079 = vunpack.c.h.b16 %v1055
  %v1080 = vunpack.c.h.b16 %v1056
  %v1081 = vpack.c.b16 %v1066, %v1065
  %v1082 = vpack.c.b16 %v1068, %v1067
  %v1083 = vpack.c.b16 %v1070, %v1069
  %v1084 = vpack.c.b16 %v1072, %v1071
  %v1085 = vpack.c.b16 %v1074, %v1073
  %v1086 = vpack.c.b16 %v1076, %v1075
  %v1087 = vpack.c.b16 %v1078, %v1077
  %v1088 = vpack.c.b16 %v1080, %v1079
  %1097 = vst [vmem:[#allocation3 + $0x40] sm:$0xff] %v1081
  %1098 = vst [vmem:[#allocation3 + $0x48] sm:$0xff] %v1082
  %1099 = vst [vmem:[#allocation3 + $0x50] sm:$0xff] %v1083
  %1100 = vst [vmem:[#allocation3 + $0x58] sm:$0xff] %v1084
  %1101 = vst [vmem:[#allocation3 + $0x60] sm:$0xff] %v1085
  %1102 = vst [vmem:[#allocation3 + $0x68] sm:$0xff] %v1086
  %1103 = vst [vmem:[#allocation3 + $0x70] sm:$0xff] %v1087
  %1104 = vst [vmem:[#allocation3 + $0x78] sm:$0xff] %v1088
  %1105 = vrot.lane.b32.xlu0 %v849, 15
  %v1106 = vpop.permute.xlu0 %1105
  %1107 = vrot.lane.b32.xlu0 %v853, 15
  %v1108 = vpop.permute.xlu0 %1107
  %1109 = vrot.lane.b32.xlu0 %v857, 15
  %v1110 = vpop.permute.xlu0 %1109
  %1111 = vrot.lane.b32.xlu0 %v861, 15
  %v1112 = vpop.permute.xlu0 %1111
  %1113 = vrot.lane.b32.xlu0 %v850, 15
  %v1114 = vpop.permute.xlu0 %1113
  %1115 = vrot.lane.b32.xlu0 %v854, 15
  %v1116 = vpop.permute.xlu0 %1115
  %1117 = vrot.lane.b32.xlu0 %v858, 15
  %v1118 = vpop.permute.xlu0 %1117
  %1119 = vrot.lane.b32.xlu0 %v862, 15
  %v1120 = vpop.permute.xlu0 %1119
  %1121 = vrot.lane.b32.xlu0 %v851, 15
  %v1122 = vpop.permute.xlu0 %1121
  %1123 = vrot.lane.b32.xlu0 %v855, 15
  %v1124 = vpop.permute.xlu0 %1123
  %1125 = vrot.lane.b32.xlu0 %v859, 15
  %v1126 = vpop.permute.xlu0 %1125
  %1127 = vrot.lane.b32.xlu0 %v863, 15
  %v1128 = vpop.permute.xlu0 %1127
  %1129 = vrot.lane.b32.xlu0 %v852, 15
  %v1130 = vpop.permute.xlu0 %1129
  %1131 = vrot.lane.b32.xlu0 %v856, 15
  %v1132 = vpop.permute.xlu0 %1131
  %1133 = vrot.lane.b32.xlu0 %v860, 15
  %v1134 = vpop.permute.xlu0 %1133
  %1135 = vrot.lane.b32.xlu0 %v864, 15
  %v1136 = vpop.permute.xlu0 %1135
  %v1137 = vsel %vm176, %v1122, %v1130
  %v1138 = vsel %vm176, %v1124, %v1132
  %v1139 = vsel %vm176, %v1126, %v1134
  %v1140 = vsel %vm176, %v1128, %v1136
  %v1141 = vsel %vm176, %v1114, %v1122
  %v1142 = vsel %vm176, %v1116, %v1124
  %v1143 = vsel %vm176, %v1118, %v1126
  %v1144 = vsel %vm176, %v1120, %v1128
  %v1145 = vsel %vm176, %v1106, %v1114
  %v1146 = vsel %vm176, %v1108, %v1116
  %v1147 = vsel %vm176, %v1110, %v1118
  %v1148 = vsel %vm176, %v1112, %v1120
  %v1149 = vsel %vm176, %v1130, %v1106
  %v1150 = vsel %vm176, %v1132, %v1108
  %v1151 = vsel %vm176, %v1134, %v1110
  %v1152 = vsel %vm176, %v1136, %v1112
  %v1153 = vsel %vm185, %v1149, 0.0
  %v1154 = vsel %vm186, %v1145, 0.0
  %v1155 = vsel %vm187, %v1141, 0.0
  %v1156 = vsel %vm188, %v1137, 0.0
  %v1157 = vsel %vm185, %v1150, 0.0
  %v1158 = vsel %vm186, %v1146, 0.0
  %v1159 = vsel %vm187, %v1142, 0.0
  %v1160 = vsel %vm188, %v1138, 0.0
  %v1161 = vsel %vm185, %v1151, 0.0
  %v1162 = vsel %vm186, %v1147, 0.0
  %v1163 = vsel %vm187, %v1143, 0.0
  %v1164 = vsel %vm188, %v1139, 0.0
  %v1165 = vsel %vm185, %v1152, 0.0
  %v1166 = vsel %vm186, %v1148, 0.0
  %v1167 = vsel %vm187, %v1144, 0.0
  %v1168 = vsel %vm188, %v1140, 0.0
  %v1169 = vpack.c.bf16 %v1157, %v1153
  %v1170 = vpack.c.bf16 %v1158, %v1154
  %v1171 = vpack.c.bf16 %v1159, %v1155
  %v1172 = vpack.c.bf16 %v1160, %v1156
  %v1173 = vpack.c.bf16 %v1165, %v1161
  %v1174 = vpack.c.bf16 %v1166, %v1162
  %v1175 = vpack.c.bf16 %v1167, %v1163
  %v1176 = vpack.c.bf16 %v1168, %v1164
  %v1185 = vunpack.c.l.b16 %v1169
  %v1186 = vunpack.c.l.b16 %v1170
  %v1187 = vunpack.c.l.b16 %v1171
  %v1188 = vunpack.c.l.b16 %v1172
  %v1189 = vunpack.c.h.b16 %v1169
  %v1190 = vunpack.c.h.b16 %v1170
  %v1191 = vunpack.c.h.b16 %v1171
  %v1192 = vunpack.c.h.b16 %v1172
  %v1193 = vunpack.c.l.b16 %v1173
  %v1194 = vunpack.c.l.b16 %v1174
  %v1195 = vunpack.c.l.b16 %v1175
  %v1196 = vunpack.c.l.b16 %v1176
  %v1197 = vunpack.c.h.b16 %v1173
  %v1198 = vunpack.c.h.b16 %v1174
  %v1199 = vunpack.c.h.b16 %v1175
  %v1200 = vunpack.c.h.b16 %v1176
  %v1201 = vpack.c.b16 %v1186, %v1185
  %v1202 = vpack.c.b16 %v1188, %v1187
  %v1203 = vpack.c.b16 %v1190, %v1189
  %v1204 = vpack.c.b16 %v1192, %v1191
  %v1205 = vpack.c.b16 %v1194, %v1193
  %v1206 = vpack.c.b16 %v1196, %v1195
  %v1207 = vpack.c.b16 %v1198, %v1197
  %v1208 = vpack.c.b16 %v1200, %v1199
  %1217 = vst [vmem:[#allocation3 + $0x80] sm:$0xff] %v1201
  %1218 = vst [vmem:[#allocation3 + $0x88] sm:$0xff] %v1202
  %1219 = vst [vmem:[#allocation3 + $0x90] sm:$0xff] %v1203
  %1220 = vst [vmem:[#allocation3 + $0x98] sm:$0xff] %v1204
  %1221 = vst [vmem:[#allocation3 + $0xa0] sm:$0xff] %v1205
  %1222 = vst [vmem:[#allocation3 + $0xa8] sm:$0xff] %v1206
  %1223 = vst [vmem:[#allocation3 + $0xb0] sm:$0xff] %v1207
  %1224 = vst [vmem:[#allocation3 + $0xb8] sm:$0xff] %v1208
  %1225 = vrot.lane.b32.xlu0 %v849, 1
  %v1226 = vpop.permute.xlu0 %1225
  %1227 = vrot.lane.b32.xlu0 %v853, 1
  %v1228 = vpop.permute.xlu0 %1227
  %1229 = vrot.lane.b32.xlu0 %v857, 1
  %v1230 = vpop.permute.xlu0 %1229
  %1231 = vrot.lane.b32.xlu0 %v861, 1
  %v1232 = vpop.permute.xlu0 %1231
  %1233 = vrot.lane.b32.xlu0 %v850, 1
  %v1234 = vpop.permute.xlu0 %1233
  %1235 = vrot.lane.b32.xlu0 %v854, 1
  %v1236 = vpop.permute.xlu0 %1235
  %1237 = vrot.lane.b32.xlu0 %v858, 1
  %v1238 = vpop.permute.xlu0 %1237
  %1239 = vrot.lane.b32.xlu0 %v862, 1
  %v1240 = vpop.permute.xlu0 %1239
  %1241 = vrot.lane.b32.xlu0 %v851, 1
  %v1242 = vpop.permute.xlu0 %1241
  %1243 = vrot.lane.b32.xlu0 %v855, 1
  %v1244 = vpop.permute.xlu0 %1243
  %1245 = vrot.lane.b32.xlu0 %v859, 1
  %v1246 = vpop.permute.xlu0 %1245
  %1247 = vrot.lane.b32.xlu0 %v863, 1
  %v1248 = vpop.permute.xlu0 %1247
  %1249 = vrot.lane.b32.xlu0 %v852, 1
  %v1250 = vpop.permute.xlu0 %1249
  %1251 = vrot.lane.b32.xlu0 %v856, 1
  %v1252 = vpop.permute.xlu0 %1251
  %1253 = vrot.lane.b32.xlu0 %v860, 1
  %v1254 = vpop.permute.xlu0 %1253
  %1255 = vrot.lane.b32.xlu0 %v864, 1
  %v1256 = vpop.permute.xlu0 %1255
  %v1257 = vsel %vm219, %v1242, %v1250
  %v1258 = vsel %vm219, %v1244, %v1252
  %v1259 = vsel %vm219, %v1246, %v1254
  %v1260 = vsel %vm219, %v1248, %v1256
  %v1261 = vsel %vm219, %v1234, %v1242
  %v1262 = vsel %vm219, %v1236, %v1244
  %v1263 = vsel %vm219, %v1238, %v1246
  %v1264 = vsel %vm219, %v1240, %v1248
  %v1265 = vsel %vm219, %v1226, %v1234
  %v1266 = vsel %vm219, %v1228, %v1236
  %v1267 = vsel %vm219, %v1230, %v1238
  %v1268 = vsel %vm219, %v1232, %v1240
  %v1269 = vsel %vm219, %v1250, %v1226
  %v1270 = vsel %vm219, %v1252, %v1228
  %v1271 = vsel %vm219, %v1254, %v1230
  %v1272 = vsel %vm219, %v1256, %v1232
  %v1273 = vsel %vm228, %v1269, 0.0
  %v1274 = vsel %vm229, %v1265, 0.0
  %v1275 = vsel %vm230, %v1261, 0.0
  %v1276 = vsel %vm231, %v1257, 0.0
  %v1277 = vsel %vm228, %v1270, 0.0
  %v1278 = vsel %vm229, %v1266, 0.0
  %v1279 = vsel %vm230, %v1262, 0.0
  %v1280 = vsel %vm231, %v1258, 0.0
  %v1281 = vsel %vm228, %v1271, 0.0
  %v1282 = vsel %vm229, %v1267, 0.0
  %v1283 = vsel %vm230, %v1263, 0.0
  %v1284 = vsel %vm231, %v1259, 0.0
  %v1285 = vsel %vm228, %v1272, 0.0
  %v1286 = vsel %vm229, %v1268, 0.0
  %v1287 = vsel %vm230, %v1264, 0.0
  %v1288 = vsel %vm231, %v1260, 0.0
  %v1289 = vpack.c.bf16 %v1277, %v1273
  %v1290 = vpack.c.bf16 %v1278, %v1274
  %v1291 = vpack.c.bf16 %v1279, %v1275
  %v1292 = vpack.c.bf16 %v1280, %v1276
  %v1293 = vpack.c.bf16 %v1285, %v1281
  %v1294 = vpack.c.bf16 %v1286, %v1282
  %v1295 = vpack.c.bf16 %v1287, %v1283
  %v1296 = vpack.c.bf16 %v1288, %v1284
  %v1305 = vunpack.c.l.b16 %v1289
  %v1306 = vunpack.c.l.b16 %v1290
  %v1307 = vunpack.c.l.b16 %v1291
  %v1308 = vunpack.c.l.b16 %v1292
  %v1309 = vunpack.c.h.b16 %v1289
  %v1310 = vunpack.c.h.b16 %v1290
  %v1311 = vunpack.c.h.b16 %v1291
  %v1312 = vunpack.c.h.b16 %v1292
  %v1313 = vunpack.c.l.b16 %v1293
  %v1314 = vunpack.c.l.b16 %v1294
  %v1315 = vunpack.c.l.b16 %v1295
  %v1316 = vunpack.c.l.b16 %v1296
  %v1317 = vunpack.c.h.b16 %v1293
  %v1318 = vunpack.c.h.b16 %v1294
  %v1319 = vunpack.c.h.b16 %v1295
  %v1320 = vunpack.c.h.b16 %v1296
  %v1321 = vpack.c.b16 %v1306, %v1305
  %v1322 = vpack.c.b16 %v1308, %v1307
  %v1323 = vpack.c.b16 %v1310, %v1309
  %v1324 = vpack.c.b16 %v1312, %v1311
  %v1325 = vpack.c.b16 %v1314, %v1313
  %v1326 = vpack.c.b16 %v1316, %v1315
  %v1327 = vpack.c.b16 %v1318, %v1317
  %v1328 = vpack.c.b16 %v1320, %v1319
  %1337 = vst [vmem:[#allocation3 + $0xc0] sm:$0xff] %v1321
  %1338 = vst [vmem:[#allocation3 + $0xc8] sm:$0xff] %v1322
  %1339 = vst [vmem:[#allocation3 + $0xd0] sm:$0xff] %v1323
  %1340 = vst [vmem:[#allocation3 + $0xd8] sm:$0xff] %v1324
  %1341 = vst [vmem:[#allocation3 + $0xe0] sm:$0xff] %v1325
  %1342 = vst [vmem:[#allocation3 + $0xe8] sm:$0xff] %v1326
  %1343 = vst [vmem:[#allocation3 + $0xf0] sm:$0xff] %v1327
  %1344 = vst [vmem:[#allocation3 + $0xf8] sm:$0xff] %v1328
  %v1345 = vpack.c.bf16 %v853, %v849
  %v1346 = vpack.c.bf16 %v854, %v850
  %v1347 = vpack.c.bf16 %v855, %v851
  %v1348 = vpack.c.bf16 %v856, %v852
  %v1349 = vpack.c.bf16 %v861, %v857
  %v1350 = vpack.c.bf16 %v862, %v858
  %v1351 = vpack.c.bf16 %v863, %v859
  %v1352 = vpack.c.bf16 %v864, %v860
  %v1361 = vunpack.c.l.b16 %v1345
  %v1362 = vunpack.c.l.b16 %v1346
  %v1363 = vunpack.c.l.b16 %v1347
  %v1364 = vunpack.c.l.b16 %v1348
  %v1365 = vunpack.c.h.b16 %v1345
  %v1366 = vunpack.c.h.b16 %v1346
  %v1367 = vunpack.c.h.b16 %v1347
  %v1368 = vunpack.c.h.b16 %v1348
  %v1369 = vunpack.c.l.b16 %v1349
  %v1370 = vunpack.c.l.b16 %v1350
  %v1371 = vunpack.c.l.b16 %v1351
  %v1372 = vunpack.c.l.b16 %v1352
  %v1373 = vunpack.c.h.b16 %v1349
  %v1374 = vunpack.c.h.b16 %v1350
  %v1375 = vunpack.c.h.b16 %v1351
  %v1376 = vunpack.c.h.b16 %v1352
  %v1377 = vpack.c.b16 %v1362, %v1361
  %v1378 = vpack.c.b16 %v1364, %v1363
  %v1379 = vpack.c.b16 %v1366, %v1365
  %v1380 = vpack.c.b16 %v1368, %v1367
  %v1381 = vpack.c.b16 %v1370, %v1369
  %v1382 = vpack.c.b16 %v1372, %v1371
  %v1383 = vpack.c.b16 %v1374, %v1373
  %v1384 = vpack.c.b16 %v1376, %v1375
  %1393 = vst [vmem:[#allocation3 + $0x100] sm:$0xff] %v1377
  %1394 = vst [vmem:[#allocation3 + $0x108] sm:$0xff] %v1378
  %1395 = vst [vmem:[#allocation3 + $0x110] sm:$0xff] %v1379
  %1396 = vst [vmem:[#allocation3 + $0x118] sm:$0xff] %v1380
  %1397 = vst [vmem:[#allocation3 + $0x120] sm:$0xff] %v1381
  %1398 = vst [vmem:[#allocation3 + $0x128] sm:$0xff] %v1382
  %1399 = vst [vmem:[#allocation3 + $0x130] sm:$0xff] %v1383
  %1400 = vst [vmem:[#allocation3 + $0x138] sm:$0xff] %v1384
  %1401 = vrot.lane.b32.xlu0 %v849, 127
  %v1402 = vpop.permute.xlu0 %1401
  %1403 = vrot.lane.b32.xlu0 %v853, 127
  %v1404 = vpop.permute.xlu0 %1403
  %1405 = vrot.lane.b32.xlu0 %v857, 127
  %v1406 = vpop.permute.xlu0 %1405
  %1407 = vrot.lane.b32.xlu0 %v861, 127
  %v1408 = vpop.permute.xlu0 %1407
  %1409 = vrot.lane.b32.xlu0 %v850, 127
  %v1410 = vpop.permute.xlu0 %1409
  %1411 = vrot.lane.b32.xlu0 %v854, 127
  %v1412 = vpop.permute.xlu0 %1411
  %1413 = vrot.lane.b32.xlu0 %v858, 127
  %v1414 = vpop.permute.xlu0 %1413
  %1415 = vrot.lane.b32.xlu0 %v862, 127
  %v1416 = vpop.permute.xlu0 %1415
  %1417 = vrot.lane.b32.xlu0 %v851, 127
  %v1418 = vpop.permute.xlu0 %1417
  %1419 = vrot.lane.b32.xlu0 %v855, 127
  %v1420 = vpop.permute.xlu0 %1419
  %1421 = vrot.lane.b32.xlu0 %v859, 127
  %v1422 = vpop.permute.xlu0 %1421
  %1423 = vrot.lane.b32.xlu0 %v863, 127
  %v1424 = vpop.permute.xlu0 %1423
  %1425 = vrot.lane.b32.xlu0 %v852, 127
  %v1426 = vpop.permute.xlu0 %1425
  %1427 = vrot.lane.b32.xlu0 %v856, 127
  %v1428 = vpop.permute.xlu0 %1427
  %1429 = vrot.lane.b32.xlu0 %v860, 127
  %v1430 = vpop.permute.xlu0 %1429
  %1431 = vrot.lane.b32.xlu0 %v864, 127
  %v1432 = vpop.permute.xlu0 %1431
  %v1433 = vsel %vm282, %v1418, %v1426
  %v1434 = vsel %vm282, %v1420, %v1428
  %v1435 = vsel %vm282, %v1422, %v1430
  %v1436 = vsel %vm282, %v1424, %v1432
  %v1437 = vsel %vm282, %v1410, %v1418
  %v1438 = vsel %vm282, %v1412, %v1420
  %v1439 = vsel %vm282, %v1414, %v1422
  %v1440 = vsel %vm282, %v1416, %v1424
  %v1441 = vsel %vm282, %v1402, %v1410
  %v1442 = vsel %vm282, %v1404, %v1412
  %v1443 = vsel %vm282, %v1406, %v1414
  %v1444 = vsel %vm282, %v1408, %v1416
  %v1445 = vsel %vm282, %v1426, %v1402
  %v1446 = vsel %vm282, %v1428, %v1404
  %v1447 = vsel %vm282, %v1430, %v1406
  %v1448 = vsel %vm282, %v1432, %v1408
  %v1449 = vsel %vm291, %v1441, 0.0
  %v1450 = vsel %vm292, %v1437, 0.0
  %v1451 = vsel %vm293, %v1433, 0.0
  %v1452 = vsel %vm294, %v1445, 0.0
  %v1453 = vsel %vm291, %v1442, 0.0
  %v1454 = vsel %vm292, %v1438, 0.0
  %v1455 = vsel %vm293, %v1434, 0.0
  %v1456 = vsel %vm294, %v1446, 0.0
  %v1457 = vsel %vm291, %v1443, 0.0
  %v1458 = vsel %vm292, %v1439, 0.0
  %v1459 = vsel %vm293, %v1435, 0.0
  %v1460 = vsel %vm294, %v1447, 0.0
  %v1461 = vsel %vm291, %v1444, 0.0
  %v1462 = vsel %vm292, %v1440, 0.0
  %v1463 = vsel %vm293, %v1436, 0.0
  %v1464 = vsel %vm294, %v1448, 0.0
  %v1465 = vpack.c.bf16 %v1453, %v1449
  %v1466 = vpack.c.bf16 %v1454, %v1450
  %v1467 = vpack.c.bf16 %v1455, %v1451
  %v1468 = vpack.c.bf16 %v1456, %v1452
  %v1469 = vpack.c.bf16 %v1461, %v1457
  %v1470 = vpack.c.bf16 %v1462, %v1458
  %v1471 = vpack.c.bf16 %v1463, %v1459
  %v1472 = vpack.c.bf16 %v1464, %v1460
  %v1481 = vunpack.c.l.b16 %v1465
  %v1482 = vunpack.c.l.b16 %v1466
  %v1483 = vunpack.c.l.b16 %v1467
  %v1484 = vunpack.c.l.b16 %v1468
  %v1485 = vunpack.c.h.b16 %v1465
  %v1486 = vunpack.c.h.b16 %v1466
  %v1487 = vunpack.c.h.b16 %v1467
  %v1488 = vunpack.c.h.b16 %v1468
  %v1489 = vunpack.c.l.b16 %v1469
  %v1490 = vunpack.c.l.b16 %v1470
  %v1491 = vunpack.c.l.b16 %v1471
  %v1492 = vunpack.c.l.b16 %v1472
  %v1493 = vunpack.c.h.b16 %v1469
  %v1494 = vunpack.c.h.b16 %v1470
  %v1495 = vunpack.c.h.b16 %v1471
  %v1496 = vunpack.c.h.b16 %v1472
  %v1497 = vpack.c.b16 %v1482, %v1481
  %v1498 = vpack.c.b16 %v1484, %v1483
  %v1499 = vpack.c.b16 %v1486, %v1485
  %v1500 = vpack.c.b16 %v1488, %v1487
  %v1501 = vpack.c.b16 %v1490, %v1489
  %v1502 = vpack.c.b16 %v1492, %v1491
  %v1503 = vpack.c.b16 %v1494, %v1493
  %v1504 = vpack.c.b16 %v1496, %v1495
  %1513 = vst [vmem:[#allocation3 + $0x140] sm:$0xff] %v1497
  %1514 = vst [vmem:[#allocation3 + $0x148] sm:$0xff] %v1498
  %1515 = vst [vmem:[#allocation3 + $0x150] sm:$0xff] %v1499
  %1516 = vst [vmem:[#allocation3 + $0x158] sm:$0xff] %v1500
  %1517 = vst [vmem:[#allocation3 + $0x160] sm:$0xff] %v1501
  %1518 = vst [vmem:[#allocation3 + $0x168] sm:$0xff] %v1502
  %1519 = vst [vmem:[#allocation3 + $0x170] sm:$0xff] %v1503
  %1520 = vst [vmem:[#allocation3 + $0x178] sm:$0xff] %v1504
  %1521 = vrot.lane.b32.xlu0 %v849, 113
  %v1522 = vpop.permute.xlu0 %1521
  %1523 = vrot.lane.b32.xlu0 %v853, 113
  %v1524 = vpop.permute.xlu0 %1523
  %1525 = vrot.lane.b32.xlu0 %v857, 113
  %v1526 = vpop.permute.xlu0 %1525
  %1527 = vrot.lane.b32.xlu0 %v861, 113
  %v1528 = vpop.permute.xlu0 %1527
  %1529 = vrot.lane.b32.xlu0 %v850, 113
  %v1530 = vpop.permute.xlu0 %1529
  %1531 = vrot.lane.b32.xlu0 %v854, 113
  %v1532 = vpop.permute.xlu0 %1531
  %1533 = vrot.lane.b32.xlu0 %v858, 113
  %v1534 = vpop.permute.xlu0 %1533
  %1535 = vrot.lane.b32.xlu0 %v862, 113
  %v1536 = vpop.permute.xlu0 %1535
  %1537 = vrot.lane.b32.xlu0 %v851, 113
  %v1538 = vpop.permute.xlu0 %1537
  %1539 = vrot.lane.b32.xlu0 %v855, 113
  %v1540 = vpop.permute.xlu0 %1539
  %1541 = vrot.lane.b32.xlu0 %v859, 113
  %v1542 = vpop.permute.xlu0 %1541
  %1543 = vrot.lane.b32.xlu0 %v863, 113
  %v1544 = vpop.permute.xlu0 %1543
  %1545 = vrot.lane.b32.xlu0 %v852, 113
  %v1546 = vpop.permute.xlu0 %1545
  %1547 = vrot.lane.b32.xlu0 %v856, 113
  %v1548 = vpop.permute.xlu0 %1547
  %1549 = vrot.lane.b32.xlu0 %v860, 113
  %v1550 = vpop.permute.xlu0 %1549
  %1551 = vrot.lane.b32.xlu0 %v864, 113
  %v1552 = vpop.permute.xlu0 %1551
  %v1553 = vsel %vm327, %v1538, %v1546
  %v1554 = vsel %vm327, %v1540, %v1548
  %v1555 = vsel %vm327, %v1542, %v1550
  %v1556 = vsel %vm327, %v1544, %v1552
  %v1557 = vsel %vm327, %v1530, %v1538
  %v1558 = vsel %vm327, %v1532, %v1540
  %v1559 = vsel %vm327, %v1534, %v1542
  %v1560 = vsel %vm327, %v1536, %v1544
  %v1561 = vsel %vm327, %v1522, %v1530
  %v1562 = vsel %vm327, %v1524, %v1532
  %v1563 = vsel %vm327, %v1526, %v1534
  %v1564 = vsel %vm327, %v1528, %v1536
  %v1565 = vsel %vm327, %v1546, %v1522
  %v1566 = vsel %vm327, %v1548, %v1524
  %v1567 = vsel %vm327, %v1550, %v1526
  %v1568 = vsel %vm327, %v1552, %v1528
  %v1569 = vsel %vm336, %v1561, 0.0
  %v1570 = vsel %vm337, %v1557, 0.0
  %v1571 = vsel %vm338, %v1553, 0.0
  %v1572 = vsel %vm339, %v1565, 0.0
  %v1573 = vsel %vm336, %v1562, 0.0
  %v1574 = vsel %vm337, %v1558, 0.0
  %v1575 = vsel %vm338, %v1554, 0.0
  %v1576 = vsel %vm339, %v1566, 0.0
  %v1577 = vsel %vm336, %v1563, 0.0
  %v1578 = vsel %vm337, %v1559, 0.0
  %v1579 = vsel %vm338, %v1555, 0.0
  %v1580 = vsel %vm339, %v1567, 0.0
  %v1581 = vsel %vm336, %v1564, 0.0
  %v1582 = vsel %vm337, %v1560, 0.0
  %v1583 = vsel %vm338, %v1556, 0.0
  %v1584 = vsel %vm339, %v1568, 0.0
  %v1585 = vpack.c.bf16 %v1573, %v1569
  %v1586 = vpack.c.bf16 %v1574, %v1570
  %v1587 = vpack.c.bf16 %v1575, %v1571
  %v1588 = vpack.c.bf16 %v1576, %v1572
  %v1589 = vpack.c.bf16 %v1581, %v1577
  %v1590 = vpack.c.bf16 %v1582, %v1578
  %v1591 = vpack.c.bf16 %v1583, %v1579
  %v1592 = vpack.c.bf16 %v1584, %v1580
  %v1601 = vunpack.c.l.b16 %v1585
  %v1602 = vunpack.c.l.b16 %v1586
  %v1603 = vunpack.c.l.b16 %v1587
  %v1604 = vunpack.c.l.b16 %v1588
  %v1605 = vunpack.c.h.b16 %v1585
  %v1606 = vunpack.c.h.b16 %v1586
  %v1607 = vunpack.c.h.b16 %v1587
  %v1608 = vunpack.c.h.b16 %v1588
  %v1609 = vunpack.c.l.b16 %v1589
  %v1610 = vunpack.c.l.b16 %v1590
  %v1611 = vunpack.c.l.b16 %v1591
  %v1612 = vunpack.c.l.b16 %v1592
  %v1613 = vunpack.c.h.b16 %v1589
  %v1614 = vunpack.c.h.b16 %v1590
  %v1615 = vunpack.c.h.b16 %v1591
  %v1616 = vunpack.c.h.b16 %v1592
  %v1617 = vpack.c.b16 %v1602, %v1601
  %v1618 = vpack.c.b16 %v1604, %v1603
  %v1619 = vpack.c.b16 %v1606, %v1605
  %v1620 = vpack.c.b16 %v1608, %v1607
  %v1621 = vpack.c.b16 %v1610, %v1609
  %v1622 = vpack.c.b16 %v1612, %v1611
  %v1623 = vpack.c.b16 %v1614, %v1613
  %v1624 = vpack.c.b16 %v1616, %v1615
  %1633 = vst [vmem:[#allocation3 + $0x180] sm:$0xff] %v1617
  %1634 = vst [vmem:[#allocation3 + $0x188] sm:$0xff] %v1618
  %1635 = vst [vmem:[#allocation3 + $0x190] sm:$0xff] %v1619
  %1636 = vst [vmem:[#allocation3 + $0x198] sm:$0xff] %v1620
  %1637 = vst [vmem:[#allocation3 + $0x1a0] sm:$0xff] %v1621
  %1638 = vst [vmem:[#allocation3 + $0x1a8] sm:$0xff] %v1622
  %1639 = vst [vmem:[#allocation3 + $0x1b0] sm:$0xff] %v1623
  %1640 = vst [vmem:[#allocation3 + $0x1b8] sm:$0xff] %v1624
  %1641 = vrot.lane.b32.xlu0 %v849, 112
  %v1642 = vpop.permute.xlu0 %1641
  %1643 = vrot.lane.b32.xlu0 %v853, 112
  %v1644 = vpop.permute.xlu0 %1643
  %1645 = vrot.lane.b32.xlu0 %v857, 112
  %v1646 = vpop.permute.xlu0 %1645
  %1647 = vrot.lane.b32.xlu0 %v861, 112
  %v1648 = vpop.permute.xlu0 %1647
  %1649 = vrot.lane.b32.xlu0 %v850, 112
  %v1650 = vpop.permute.xlu0 %1649
  %1651 = vrot.lane.b32.xlu0 %v854, 112
  %v1652 = vpop.permute.xlu0 %1651
  %1653 = vrot.lane.b32.xlu0 %v858, 112
  %v1654 = vpop.permute.xlu0 %1653
  %1655 = vrot.lane.b32.xlu0 %v862, 112
  %v1656 = vpop.permute.xlu0 %1655
  %1657 = vrot.lane.b32.xlu0 %v851, 112
  %v1658 = vpop.permute.xlu0 %1657
  %1659 = vrot.lane.b32.xlu0 %v855, 112
  %v1660 = vpop.permute.xlu0 %1659
  %1661 = vrot.lane.b32.xlu0 %v859, 112
  %v1662 = vpop.permute.xlu0 %1661
  %1663 = vrot.lane.b32.xlu0 %v863, 112
  %v1664 = vpop.permute.xlu0 %1663
  %1665 = vrot.lane.b32.xlu0 %v852, 112
  %v1666 = vpop.permute.xlu0 %1665
  %1667 = vrot.lane.b32.xlu0 %v856, 112
  %v1668 = vpop.permute.xlu0 %1667
  %1669 = vrot.lane.b32.xlu0 %v860, 112
  %v1670 = vpop.permute.xlu0 %1669
  %1671 = vrot.lane.b32.xlu0 %v864, 112
  %v1672 = vpop.permute.xlu0 %1671
  %v1673 = vsel %vm370, %v1658, %v1666
  %v1674 = vsel %vm370, %v1660, %v1668
  %v1675 = vsel %vm370, %v1662, %v1670
  %v1676 = vsel %vm370, %v1664, %v1672
  %v1677 = vsel %vm370, %v1650, %v1658
  %v1678 = vsel %vm370, %v1652, %v1660
  %v1679 = vsel %vm370, %v1654, %v1662
  %v1680 = vsel %vm370, %v1656, %v1664
  %v1681 = vsel %vm370, %v1642, %v1650
  %v1682 = vsel %vm370, %v1644, %v1652
  %v1683 = vsel %vm370, %v1646, %v1654
  %v1684 = vsel %vm370, %v1648, %v1656
  %v1685 = vsel %vm370, %v1666, %v1642
  %v1686 = vsel %vm370, %v1668, %v1644
  %v1687 = vsel %vm370, %v1670, %v1646
  %v1688 = vsel %vm370, %v1672, %v1648
  %v1689 = vsel %vm379, %v1681, 0.0
  %v1690 = vsel %vm380, %v1677, 0.0
  %v1691 = vsel %vm381, %v1673, 0.0
  %v1692 = vsel %vm382, %v1685, 0.0
  %v1693 = vsel %vm379, %v1682, 0.0
  %v1694 = vsel %vm380, %v1678, 0.0
  %v1695 = vsel %vm381, %v1674, 0.0
  %v1696 = vsel %vm382, %v1686, 0.0
  %v1697 = vsel %vm379, %v1683, 0.0
  %v1698 = vsel %vm380, %v1679, 0.0
  %v1699 = vsel %vm381, %v1675, 0.0
  %v1700 = vsel %vm382, %v1687, 0.0
  %v1701 = vsel %vm379, %v1684, 0.0
  %v1702 = vsel %vm380, %v1680, 0.0
  %v1703 = vsel %vm381, %v1676, 0.0
  %v1704 = vsel %vm382, %v1688, 0.0
  %v1705 = vpack.c.bf16 %v1693, %v1689
  %v1706 = vpack.c.bf16 %v1694, %v1690
  %v1707 = vpack.c.bf16 %v1695, %v1691
  %v1708 = vpack.c.bf16 %v1696, %v1692
  %v1709 = vpack.c.bf16 %v1701, %v1697
  %v1710 = vpack.c.bf16 %v1702, %v1698
  %v1711 = vpack.c.bf16 %v1703, %v1699
  %v1712 = vpack.c.bf16 %v1704, %v1700
  %v1721 = vunpack.c.l.b16 %v1705
  %v1722 = vunpack.c.l.b16 %v1706
  %v1723 = vunpack.c.l.b16 %v1707
  %v1724 = vunpack.c.l.b16 %v1708
  %v1725 = vunpack.c.h.b16 %v1705
  %v1726 = vunpack.c.h.b16 %v1706
  %v1727 = vunpack.c.h.b16 %v1707
  %v1728 = vunpack.c.h.b16 %v1708
  %v1729 = vunpack.c.l.b16 %v1709
  %v1730 = vunpack.c.l.b16 %v1710
  %v1731 = vunpack.c.l.b16 %v1711
  %v1732 = vunpack.c.l.b16 %v1712
  %v1733 = vunpack.c.h.b16 %v1709
  %v1734 = vunpack.c.h.b16 %v1710
  %v1735 = vunpack.c.h.b16 %v1711
  %v1736 = vunpack.c.h.b16 %v1712
  %v1737 = vpack.c.b16 %v1722, %v1721
  %v1738 = vpack.c.b16 %v1724, %v1723
  %v1739 = vpack.c.b16 %v1726, %v1725
  %v1740 = vpack.c.b16 %v1728, %v1727
  %v1741 = vpack.c.b16 %v1730, %v1729
  %v1742 = vpack.c.b16 %v1732, %v1731
  %v1743 = vpack.c.b16 %v1734, %v1733
  %v1744 = vpack.c.b16 %v1736, %v1735
  %1753 = vst [vmem:[#allocation3 + $0x1c0] sm:$0xff] %v1737
  %1754 = vst [vmem:[#allocation3 + $0x1c8] sm:$0xff] %v1738
  %1755 = vst [vmem:[#allocation3 + $0x1d0] sm:$0xff] %v1739
  %1756 = vst [vmem:[#allocation3 + $0x1d8] sm:$0xff] %v1740
  %1757 = vst [vmem:[#allocation3 + $0x1e0] sm:$0xff] %v1741
  %1758 = vst [vmem:[#allocation3 + $0x1e8] sm:$0xff] %v1742
  %1759 = vst [vmem:[#allocation3 + $0x1f0] sm:$0xff] %v1743
  %1760 = vst [vmem:[#allocation3 + $0x1f8] sm:$0xff] %v1744
  %1761 = vrot.lane.b32.xlu0 %v849, 111
  %v1762 = vpop.permute.xlu0 %1761
  %1763 = vrot.lane.b32.xlu0 %v853, 111
  %v1764 = vpop.permute.xlu0 %1763
  %1765 = vrot.lane.b32.xlu0 %v857, 111
  %v1766 = vpop.permute.xlu0 %1765
  %1767 = vrot.lane.b32.xlu0 %v861, 111
  %v1768 = vpop.permute.xlu0 %1767
  %1769 = vrot.lane.b32.xlu0 %v850, 111
  %v1770 = vpop.permute.xlu0 %1769
  %1771 = vrot.lane.b32.xlu0 %v854, 111
  %v1772 = vpop.permute.xlu0 %1771
  %1773 = vrot.lane.b32.xlu0 %v858, 111
  %v1774 = vpop.permute.xlu0 %1773
  %1775 = vrot.lane.b32.xlu0 %v862, 111
  %v1776 = vpop.permute.xlu0 %1775
  %1777 = vrot.lane.b32.xlu0 %v851, 111
  %v1778 = vpop.permute.xlu0 %1777
  %1779 = vrot.lane.b32.xlu0 %v855, 111
  %v1780 = vpop.permute.xlu0 %1779
  %1781 = vrot.lane.b32.xlu0 %v859, 111
  %v1782 = vpop.permute.xlu0 %1781
  %1783 = vrot.lane.b32.xlu0 %v863, 111
  %v1784 = vpop.permute.xlu0 %1783
  %1785 = vrot.lane.b32.xlu0 %v852, 111
  %v1786 = vpop.permute.xlu0 %1785
  %1787 = vrot.lane.b32.xlu0 %v856, 111
  %v1788 = vpop.permute.xlu0 %1787
  %1789 = vrot.lane.b32.xlu0 %v860, 111
  %v1790 = vpop.permute.xlu0 %1789
  %1791 = vrot.lane.b32.xlu0 %v864, 111
  %v1792 = vpop.permute.xlu0 %1791
  %v1793 = vsel %vm415, %v1778, %v1786
  %v1794 = vsel %vm415, %v1780, %v1788
  %v1795 = vsel %vm415, %v1782, %v1790
  %v1796 = vsel %vm415, %v1784, %v1792
  %v1797 = vsel %vm415, %v1770, %v1778
  %v1798 = vsel %vm415, %v1772, %v1780
  %v1799 = vsel %vm415, %v1774, %v1782
  %v1800 = vsel %vm415, %v1776, %v1784
  %v1801 = vsel %vm415, %v1762, %v1770
  %v1802 = vsel %vm415, %v1764, %v1772
  %v1803 = vsel %vm415, %v1766, %v1774
  %v1804 = vsel %vm415, %v1768, %v1776
  %v1805 = vsel %vm415, %v1786, %v1762
  %v1806 = vsel %vm415, %v1788, %v1764
  %v1807 = vsel %vm415, %v1790, %v1766
  %v1808 = vsel %vm415, %v1792, %v1768
  %v1809 = vsel %vm424, %v1801, 0.0
  %v1810 = vsel %vm425, %v1797, 0.0
  %v1811 = vsel %vm426, %v1793, 0.0
  %v1812 = vsel %vm427, %v1805, 0.0
  %v1813 = vsel %vm424, %v1802, 0.0
  %v1814 = vsel %vm425, %v1798, 0.0
  %v1815 = vsel %vm426, %v1794, 0.0
  %v1816 = vsel %vm427, %v1806, 0.0
  %v1817 = vsel %vm424, %v1803, 0.0
  %v1818 = vsel %vm425, %v1799, 0.0
  %v1819 = vsel %vm426, %v1795, 0.0
  %v1820 = vsel %vm427, %v1807, 0.0
  %v1821 = vsel %vm424, %v1804, 0.0
  %v1822 = vsel %vm425, %v1800, 0.0
  %v1823 = vsel %vm426, %v1796, 0.0
  %v1824 = vsel %vm427, %v1808, 0.0
  %v1825 = vpack.c.bf16 %v1813, %v1809
  %v1826 = vpack.c.bf16 %v1814, %v1810
  %v1827 = vpack.c.bf16 %v1815, %v1811
  %v1828 = vpack.c.bf16 %v1816, %v1812
  %v1829 = vpack.c.bf16 %v1821, %v1817
  %v1830 = vpack.c.bf16 %v1822, %v1818
  %v1831 = vpack.c.bf16 %v1823, %v1819
  %v1832 = vpack.c.bf16 %v1824, %v1820
  %v1841 = vunpack.c.l.b16 %v1825
  %v1842 = vunpack.c.l.b16 %v1826
  %v1843 = vunpack.c.l.b16 %v1827
  %v1844 = vunpack.c.l.b16 %v1828
  %v1845 = vunpack.c.h.b16 %v1825
  %v1846 = vunpack.c.h.b16 %v1826
  %v1847 = vunpack.c.h.b16 %v1827
  %v1848 = vunpack.c.h.b16 %v1828
  %v1849 = vunpack.c.l.b16 %v1829
  %v1850 = vunpack.c.l.b16 %v1830
  %v1851 = vunpack.c.l.b16 %v1831
  %v1852 = vunpack.c.l.b16 %v1832
  %v1853 = vunpack.c.h.b16 %v1829
  %v1854 = vunpack.c.h.b16 %v1830
  %v1855 = vunpack.c.h.b16 %v1831
  %v1856 = vunpack.c.h.b16 %v1832
  %v1857 = vpack.c.b16 %v1842, %v1841
  %v1858 = vpack.c.b16 %v1844, %v1843
  %v1859 = vpack.c.b16 %v1846, %v1845
  %v1860 = vpack.c.b16 %v1848, %v1847
  %v1861 = vpack.c.b16 %v1850, %v1849
  %v1862 = vpack.c.b16 %v1852, %v1851
  %v1863 = vpack.c.b16 %v1854, %v1853
  %v1864 = vpack.c.b16 %v1856, %v1855
  %1873 = vst [vmem:[#allocation3 + $0x200] sm:$0xff] %v1857
  %1874 = vst [vmem:[#allocation3 + $0x208] sm:$0xff] %v1858
  %1875 = vst [vmem:[#allocation3 + $0x210] sm:$0xff] %v1859
  %1876 = vst [vmem:[#allocation3 + $0x218] sm:$0xff] %v1860
  %1877 = vst [vmem:[#allocation3 + $0x220] sm:$0xff] %v1861
  %1878 = vst [vmem:[#allocation3 + $0x228] sm:$0xff] %v1862
  %1879 = vst [vmem:[#allocation3 + $0x230] sm:$0xff] %v1863
  %1880 = vst [vmem:[#allocation3 + $0x238] sm:$0xff] %v1864
  %v1881 = vld [vmem:[%s5] sm:$0xff]
  %v1882 = vld [vmem:[%s5 + $0x8] sm:$0xf]
  %v1883 = vld [vmem:[#allocation3] sm:$0xff]
  %v1884 = vld [vmem:[#allocation3 + $0x8] sm:$0xff]
  %v1885 = vld [vmem:[#allocation3 + $0x10] sm:$0xff]
  %v1886 = vld [vmem:[#allocation3 + $0x18] sm:$0xff]
  %v1887 = vld [vmem:[#allocation3 + $0x20] sm:$0xff]
  %v1888 = vld [vmem:[#allocation3 + $0x28] sm:$0xff]
  %v1889 = vld [vmem:[#allocation3 + $0x30] sm:$0xff]
  %v1890 = vld [vmem:[#allocation3 + $0x38] sm:$0xff]
  %v1891 = vld [vmem:[#allocation3 + $0x40] sm:$0xff]
  %v1892 = vld [vmem:[#allocation3 + $0x48] sm:$0xff]
  %v1893 = vld [vmem:[#allocation3 + $0x50] sm:$0xff]
  %v1894 = vld [vmem:[#allocation3 + $0x58] sm:$0xff]
  %v1895 = vld [vmem:[#allocation3 + $0x60] sm:$0xff]
  %v1896 = vld [vmem:[#allocation3 + $0x68] sm:$0xff]
  %v1897 = vld [vmem:[#allocation3 + $0x70] sm:$0xff]
  %v1898 = vld [vmem:[#allocation3 + $0x78] sm:$0xff]
  %v1899 = vld [vmem:[#allocation3 + $0x80] sm:$0xff]
  %v1900 = vld [vmem:[#allocation3 + $0x88] sm:$0xff]
  %v1901 = vld [vmem:[#allocation3 + $0x90] sm:$0xff]
  %v1902 = vld [vmem:[#allocation3 + $0x98] sm:$0xff]
  %v1903 = vld [vmem:[#allocation3 + $0xa0] sm:$0xff]
  %v1904 = vld [vmem:[#allocation3 + $0xa8] sm:$0xff]
  %v1905 = vld [vmem:[#allocation3 + $0xb0] sm:$0xff]
  %v1906 = vld [vmem:[#allocation3 + $0xb8] sm:$0xff]
  %v1907 = vld [vmem:[#allocation3 + $0xc0] sm:$0xff]
  %v1908 = vld [vmem:[#allocation3 + $0xc8] sm:$0xff]
  %v1909 = vld [vmem:[#allocation3 + $0xd0] sm:$0xff]
  %v1910 = vld [vmem:[#allocation3 + $0xd8] sm:$0xff]
  %v1911 = vld [vmem:[#allocation3 + $0xe0] sm:$0xff]
  %v1912 = vld [vmem:[#allocation3 + $0xe8] sm:$0xff]
  %v1913 = vld [vmem:[#allocation3 + $0xf0] sm:$0xff]
  %v1914 = vld [vmem:[#allocation3 + $0xf8] sm:$0xff]
  %v1915 = vld [vmem:[#allocation3 + $0x100] sm:$0xff]
  %v1916 = vld [vmem:[#allocation3 + $0x108] sm:$0xff]
  %v1917 = vld [vmem:[#allocation3 + $0x110] sm:$0xff]
  %v1918 = vld [vmem:[#allocation3 + $0x118] sm:$0xff]
  %v1919 = vld [vmem:[#allocation3 + $0x120] sm:$0xff]
  %v1920 = vld [vmem:[#allocation3 + $0x128] sm:$0xff]
  %v1921 = vld [vmem:[#allocation3 + $0x130] sm:$0xff]
  %v1922 = vld [vmem:[#allocation3 + $0x138] sm:$0xff]
  %v1923 = vld [vmem:[#allocation3 + $0x140] sm:$0xff]
  %v1924 = vld [vmem:[#allocation3 + $0x148] sm:$0xff]
  %v1925 = vld [vmem:[#allocation3 + $0x150] sm:$0xff]
  %v1926 = vld [vmem:[#allocation3 + $0x158] sm:$0xff]
  %v1927 = vld [vmem:[#allocation3 + $0x160] sm:$0xff]
  %v1928 = vld [vmem:[#allocation3 + $0x168] sm:$0xff]
  %v1929 = vld [vmem:[#allocation3 + $0x170] sm:$0xff]
  %v1930 = vld [vmem:[#allocation3 + $0x178] sm:$0xff]
  %v1931 = vld [vmem:[#allocation3 + $0x180] sm:$0xff]
  %v1932 = vld [vmem:[#allocation3 + $0x188] sm:$0xff]
  %v1933 = vld [vmem:[#allocation3 + $0x190] sm:$0xff]
  %v1934 = vld [vmem:[#allocation3 + $0x198] sm:$0xff]
  %v1935 = vld [vmem:[#allocation3 + $0x1a0] sm:$0xff]
  %v1936 = vld [vmem:[#allocation3 + $0x1a8] sm:$0xff]
  %v1937 = vld [vmem:[#allocation3 + $0x1b0] sm:$0xff]
  %v1938 = vld [vmem:[#allocation3 + $0x1b8] sm:$0xff]
  %v1939 = vld [vmem:[#allocation3 + $0x1c0] sm:$0xff]
  %v1940 = vld [vmem:[#allocation3 + $0x1c8] sm:$0xff]
  %v1941 = vld [vmem:[#allocation3 + $0x1d0] sm:$0xff]
  %v1942 = vld [vmem:[#allocation3 + $0x1d8] sm:$0xff]
  %v1943 = vld [vmem:[#allocation3 + $0x1e0] sm:$0xff]
  %v1944 = vld [vmem:[#allocation3 + $0x1e8] sm:$0xff]
  %v1945 = vld [vmem:[#allocation3 + $0x1f0] sm:$0xff]
  %v1946 = vld [vmem:[#allocation3 + $0x1f8] sm:$0xff]
  %v1947 = vld [vmem:[#allocation3 + $0x200] sm:$0xff]
  %v1948 = vld [vmem:[#allocation3 + $0x208] sm:$0xff]
  %v1949 = vld [vmem:[#allocation3 + $0x210] sm:$0xff]
  %v1950 = vld [vmem:[#allocation3 + $0x218] sm:$0xff]
  %v1951 = vld [vmem:[#allocation3 + $0x220] sm:$0xff]
  %v1952 = vld [vmem:[#allocation3 + $0x228] sm:$0xff]
  %v1953 = vld [vmem:[#allocation3 + $0x230] sm:$0xff]
  %v1954 = vld [vmem:[#allocation3 + $0x238] sm:$0xff]
  %v1955 = vld [vmem:[%s6] sm:$0xff]
  %1957 = vset.pattern.permute.xlu0 0
  %1958 = vperm.xlu0 %1957, %v1955
  %v1959 = vpop.permute.xlu0 %1958
  %v1963 = vunpack.c.l.b16 %v1881
  %v1964 = vunpack.c.h.b16 %v1881
  %v1965 = vunpack.c.l.b16 %v1882
  %v1966 = vpack.c.b16 %v1963, %v1963
  %v1967 = vpack.c.b16 %v1964, %v1964
  %v1968 = vpack.c.b16 %v1965, %v1965
  %v2043 = vunpack.c.l.b16 %v1883
  %v2044 = vunpack.c.h.b16 %v1883
  %v2045 = vunpack.c.l.b16 %v1884
  %v2046 = vunpack.c.h.b16 %v1884
  %v2047 = vunpack.c.l.b16 %v1885
  %v2048 = vunpack.c.h.b16 %v1885
  %v2049 = vunpack.c.l.b16 %v1886
  %v2050 = vunpack.c.h.b16 %v1886
  %v2051 = vunpack.c.l.b16 %v1887
  %v2052 = vunpack.c.h.b16 %v1887
  %v2053 = vunpack.c.l.b16 %v1888
  %v2054 = vunpack.c.h.b16 %v1888
  %v2055 = vunpack.c.l.b16 %v1889
  %v2056 = vunpack.c.h.b16 %v1889
  %v2057 = vunpack.c.l.b16 %v1890
  %v2058 = vunpack.c.h.b16 %v1890
  %v2059 = vunpack.c.l.b16 %v1891
  %v2060 = vunpack.c.h.b16 %v1891
  %v2061 = vunpack.c.l.b16 %v1892
  %v2062 = vunpack.c.h.b16 %v1892
  %v2063 = vunpack.c.l.b16 %v1893
  %v2064 = vunpack.c.h.b16 %v1893
  %v2065 = vunpack.c.l.b16 %v1894
  %v2066 = vunpack.c.h.b16 %v1894
  %v2067 = vunpack.c.l.b16 %v1895
  %v2068 = vunpack.c.h.b16 %v1895
  %v2069 = vunpack.c.l.b16 %v1896
  %v2070 = vunpack.c.h.b16 %v1896
  %v2071 = vunpack.c.l.b16 %v1897
  %v2072 = vunpack.c.h.b16 %v1897
  %v2073 = vunpack.c.l.b16 %v1898
  %v2074 = vunpack.c.h.b16 %v1898
  %v2075 = vunpack.c.l.b16 %v1899
  %v2076 = vunpack.c.h.b16 %v1899
  %v2077 = vunpack.c.l.b16 %v1900
  %v2078 = vunpack.c.h.b16 %v1900
  %v2079 = vunpack.c.l.b16 %v1901
  %v2080 = vunpack.c.h.b16 %v1901
  %v2081 = vunpack.c.l.b16 %v1902
  %v2082 = vunpack.c.h.b16 %v1902
  %v2083 = vunpack.c.l.b16 %v1903
  %v2084 = vunpack.c.h.b16 %v1903
  %v2085 = vunpack.c.l.b16 %v1904
  %v2086 = vunpack.c.h.b16 %v1904
  %v2087 = vunpack.c.l.b16 %v1905
  %v2088 = vunpack.c.h.b16 %v1905
  %v2089 = vunpack.c.l.b16 %v1906
  %v2090 = vunpack.c.h.b16 %v1906
  %v2091 = vunpack.c.l.b16 %v1907
  %v2092 = vunpack.c.h.b16 %v1907
  %v2093 = vunpack.c.l.b16 %v1908
  %v2094 = vunpack.c.h.b16 %v1908
  %v2095 = vunpack.c.l.b16 %v1909
  %v2096 = vunpack.c.h.b16 %v1909
  %v2097 = vunpack.c.l.b16 %v1910
  %v2098 = vunpack.c.h.b16 %v1910
  %v2099 = vunpack.c.l.b16 %v1911
  %v2100 = vunpack.c.h.b16 %v1911
  %v2101 = vunpack.c.l.b16 %v1912
  %v2102 = vunpack.c.h.b16 %v1912
  %v2103 = vunpack.c.l.b16 %v1913
  %v2104 = vunpack.c.h.b16 %v1913
  %v2105 = vunpack.c.l.b16 %v1914
  %v2106 = vunpack.c.h.b16 %v1914
  %v2107 = vunpack.c.l.b16 %v1915
  %v2108 = vunpack.c.h.b16 %v1915
  %v2109 = vunpack.c.l.b16 %v1916
  %v2110 = vunpack.c.h.b16 %v1916
  %v2111 = vunpack.c.l.b16 %v1917
  %v2112 = vunpack.c.h.b16 %v1917
  %v2113 = vunpack.c.l.b16 %v1918
  %v2114 = vunpack.c.h.b16 %v1918
  %v2115 = vunpack.c.l.b16 %v1919
  %v2116 = vunpack.c.h.b16 %v1919
  %v2117 = vunpack.c.l.b16 %v1920
  %v2118 = vunpack.c.h.b16 %v1920
  %v2119 = vunpack.c.l.b16 %v1921
  %v2120 = vunpack.c.h.b16 %v1921
  %v2121 = vunpack.c.l.b16 %v1922
  %v2122 = vunpack.c.h.b16 %v1922
  %v2123 = vunpack.c.l.b16 %v1923
  %v2124 = vunpack.c.h.b16 %v1923
  %v2125 = vunpack.c.l.b16 %v1924
  %v2126 = vunpack.c.h.b16 %v1924
  %v2127 = vunpack.c.l.b16 %v1925
  %v2128 = vunpack.c.h.b16 %v1925
  %v2129 = vunpack.c.l.b16 %v1926
  %v2130 = vunpack.c.h.b16 %v1926
  %v2131 = vunpack.c.l.b16 %v1927
  %v2132 = vunpack.c.h.b16 %v1927
  %v2133 = vunpack.c.l.b16 %v1928
  %v2134 = vunpack.c.h.b16 %v1928
  %v2135 = vunpack.c.l.b16 %v1929
  %v2136 = vunpack.c.h.b16 %v1929
  %v2137 = vunpack.c.l.b16 %v1930
  %v2138 = vunpack.c.h.b16 %v1930
  %v2139 = vunpack.c.l.b16 %v1931
  %v2140 = vunpack.c.h.b16 %v1931
  %v2141 = vunpack.c.l.b16 %v1932
  %v2142 = vunpack.c.h.b16 %v1932
  %v2143 = vunpack.c.l.b16 %v1933
  %v2144 = vunpack.c.h.b16 %v1933
  %v2145 = vunpack.c.l.b16 %v1934
  %v2146 = vunpack.c.h.b16 %v1934
  %v2147 = vunpack.c.l.b16 %v1935
  %v2148 = vunpack.c.h.b16 %v1935
  %v2149 = vunpack.c.l.b16 %v1936
  %v2150 = vunpack.c.h.b16 %v1936
  %v2151 = vunpack.c.l.b16 %v1937
  %v2152 = vunpack.c.h.b16 %v1937
  %v2153 = vunpack.c.l.b16 %v1938
  %v2154 = vunpack.c.h.b16 %v1938
  %v2155 = vunpack.c.l.b16 %v1939
  %v2156 = vunpack.c.h.b16 %v1939
  %v2157 = vunpack.c.l.b16 %v1940
  %v2158 = vunpack.c.h.b16 %v1940
  %v2159 = vunpack.c.l.b16 %v1941
  %v2160 = vunpack.c.h.b16 %v1941
  %v2161 = vunpack.c.l.b16 %v1942
  %v2162 = vunpack.c.h.b16 %v1942
  %v2163 = vunpack.c.l.b16 %v1943
  %v2164 = vunpack.c.h.b16 %v1943
  %v2165 = vunpack.c.l.b16 %v1944
  %v2166 = vunpack.c.h.b16 %v1944
  %v2167 = vunpack.c.l.b16 %v1945
  %v2168 = vunpack.c.h.b16 %v1945
  %v2169 = vunpack.c.l.b16 %v1946
  %v2170 = vunpack.c.h.b16 %v1946
  %v2171 = vunpack.c.l.b16 %v1947
  %v2172 = vunpack.c.h.b16 %v1947
  %v2173 = vunpack.c.l.b16 %v1948
  %v2174 = vunpack.c.h.b16 %v1948
  %v2175 = vunpack.c.l.b16 %v1949
  %v2176 = vunpack.c.h.b16 %v1949
  %v2177 = vunpack.c.l.b16 %v1950
  %v2178 = vunpack.c.h.b16 %v1950
  %v2179 = vunpack.c.l.b16 %v1951
  %v2180 = vunpack.c.h.b16 %v1951
  %v2181 = vunpack.c.l.b16 %v1952
  %v2182 = vunpack.c.h.b16 %v1952
  %v2183 = vunpack.c.l.b16 %v1953
  %v2184 = vunpack.c.h.b16 %v1953
  %v2185 = vunpack.c.l.b16 %v1954
  %v2186 = vunpack.c.h.b16 %v1954
  %v2187 = vpack.c.b16 %v2047, %v2043
  %v2188 = vpack.c.b16 %v2048, %v2044
  %v2189 = vpack.c.b16 %v2049, %v2045
  %v2190 = vpack.c.b16 %v2050, %v2046
  %v2191 = vpack.c.b16 %v2055, %v2051
  %v2192 = vpack.c.b16 %v2056, %v2052
  %v2193 = vpack.c.b16 %v2057, %v2053
  %v2194 = vpack.c.b16 %v2058, %v2054
  %v2195 = vpack.c.b16 %v2063, %v2059
  %v2196 = vpack.c.b16 %v2064, %v2060
  %v2197 = vpack.c.b16 %v2065, %v2061
  %v2198 = vpack.c.b16 %v2066, %v2062
  %v2199 = vpack.c.b16 %v2071, %v2067
  %v2200 = vpack.c.b16 %v2072, %v2068
  %v2201 = vpack.c.b16 %v2073, %v2069
  %v2202 = vpack.c.b16 %v2074, %v2070
  %v2203 = vpack.c.b16 %v2079, %v2075
  %v2204 = vpack.c.b16 %v2080, %v2076
  %v2205 = vpack.c.b16 %v2081, %v2077
  %v2206 = vpack.c.b16 %v2082, %v2078
  %v2207 = vpack.c.b16 %v2087, %v2083
  %v2208 = vpack.c.b16 %v2088, %v2084
  %v2209 = vpack.c.b16 %v2089, %v2085
  %v2210 = vpack.c.b16 %v2090, %v2086
  %v2211 = vpack.c.b16 %v2095, %v2091
  %v2212 = vpack.c.b16 %v2096, %v2092
  %v2213 = vpack.c.b16 %v2097, %v2093
  %v2214 = vpack.c.b16 %v2098, %v2094
  %v2215 = vpack.c.b16 %v2103, %v2099
  %v2216 = vpack.c.b16 %v2104, %v2100
  %v2217 = vpack.c.b16 %v2105, %v2101
  %v2218 = vpack.c.b16 %v2106, %v2102
  %v2219 = vpack.c.b16 %v2111, %v2107
  %v2220 = vpack.c.b16 %v2112, %v2108
  %v2221 = vpack.c.b16 %v2113, %v2109
  %v2222 = vpack.c.b16 %v2114, %v2110
  %v2223 = vpack.c.b16 %v2119, %v2115
  %v2224 = vpack.c.b16 %v2120, %v2116
  %v2225 = vpack.c.b16 %v2121, %v2117
  %v2226 = vpack.c.b16 %v2122, %v2118
  %v2227 = vpack.c.b16 %v2127, %v2123
  %v2228 = vpack.c.b16 %v2128, %v2124
  %v2229 = vpack.c.b16 %v2129, %v2125
  %v2230 = vpack.c.b16 %v2130, %v2126
  %v2231 = vpack.c.b16 %v2135, %v2131
  %v2232 = vpack.c.b16 %v2136, %v2132
  %v2233 = vpack.c.b16 %v2137, %v2133
  %v2234 = vpack.c.b16 %v2138, %v2134
  %v2235 = vpack.c.b16 %v2143, %v2139
  %v2236 = vpack.c.b16 %v2144, %v2140
  %v2237 = vpack.c.b16 %v2145, %v2141
  %v2238 = vpack.c.b16 %v2146, %v2142
  %v2239 = vpack.c.b16 %v2151, %v2147
  %v2240 = vpack.c.b16 %v2152, %v2148
  %v2241 = vpack.c.b16 %v2153, %v2149
  %v2242 = vpack.c.b16 %v2154, %v2150
  %v2243 = vpack.c.b16 %v2159, %v2155
  %v2244 = vpack.c.b16 %v2160, %v2156
  %v2245 = vpack.c.b16 %v2161, %v2157
  %v2246 = vpack.c.b16 %v2162, %v2158
  %v2247 = vpack.c.b16 %v2167, %v2163
  %v2248 = vpack.c.b16 %v2168, %v2164
  %v2249 = vpack.c.b16 %v2169, %v2165
  %v2250 = vpack.c.b16 %v2170, %v2166
  %v2251 = vpack.c.b16 %v2175, %v2171
  %v2252 = vpack.c.b16 %v2176, %v2172
  %v2253 = vpack.c.b16 %v2177, %v2173
  %v2254 = vpack.c.b16 %v2178, %v2174
  %v2255 = vpack.c.b16 %v2183, %v2179
  %v2256 = vpack.c.b16 %v2184, %v2180
  %v2257 = vpack.c.b16 %v2185, %v2181
  %v2258 = vpack.c.b16 %v2186, %v2182
  %v2332 = vsel %vm736, %v1968, 0
  %2334 = vmatprep.subr.bf16.mxu0 %v2216
  %2335 = vmatpush1.bf16.msra.mxu0 %v2215
  %2336 = vmatprep.subr.bf16.mxu0 %v2212
  %2337 = vmatpush1.bf16.msra.mxu0 %v2211
  %2338 = vmatprep.subr.bf16.mxu0 %v2208
  %2339 = vmatpush1.bf16.msra.mxu0 %v2207
  %2340 = vmatprep.subr.bf16.mxu0 %v2204
  %2341 = vmatpush1.bf16.msra.mxu0 %v2203
  %2342 = vmatprep.subr.bf16.mxu0 %v2200
  %2343 = vmatpush1.bf16.msra.mxu0 %v2199
  %2344 = vmatprep.subr.bf16.mxu0 %v2196
  %2345 = vmatpush1.bf16.msra.mxu0 %v2195
  %2346 = vmatprep.subr.bf16.mxu0 %v2192
  %2347 = vmatpush1.bf16.msra.mxu0 %v2191
  %2348 = vmatprep.subr.bf16.mxu0 %v2188
  %2349 = vmatpush1.bf16.msra.mxu0 %v2187
  %2350 = vmatprep.subr.bf16.mxu0 %v2248
  %2351 = vmatpush2.bf16.msra.mxu0 %v2247
  %2352 = vmatprep.subr.bf16.mxu0 %v2244
  %2353 = vmatpush2.bf16.msra.mxu0 %v2243
  %2354 = vmatprep.subr.bf16.mxu0 %v2240
  %2355 = vmatpush2.bf16.msra.mxu0 %v2239
  %2356 = vmatprep.subr.bf16.mxu0 %v2236
  %2357 = vmatpush2.bf16.msra.mxu0 %v2235
  %2358 = vmatprep.subr.bf16.mxu0 %v2232
  %2359 = vmatpush2.bf16.msra.mxu0 %v2231
  %2360 = vmatprep.subr.bf16.mxu0 %v2228
  %2361 = vmatpush2.bf16.msra.mxu0 %v2227
  %2362 = vmatprep.subr.bf16.mxu0 %v2224
  %2363 = vmatpush2.bf16.msra.mxu0 %v2223
  %2364 = vmatprep.subr.bf16.mxu0 %v2220
  %2365 = vmatpush2.bf16.msra.mxu0 %v2219
  %2366 = vmatprep.mubr.bf16.mxu0 %v1967
  %2367 = vmatmul.mubr.bf16.gmra.mxu0 %v1966
  %v2368 = vpop.f32.mrf.mxu0
  %v2369 = vadd.f32 %v1959, %v2368
  %v2370 = vpop.f32.mrf.mxu0
  %v2371 = vadd.f32 %v1959, %v2370
  %v2372 = vpop.f32.mrf.mxu0
  %v2373 = vpop.f32.mrf.mxu0
  %2374 = vdwg.mxu0
  %2375 = vmatprep.subr.bf16.mxu0 0
  %2376 = vmatpush1.bf16.msra.mxu0 0
  %2377 = vmatprep.subr.bf16.mxu0 0
  %2378 = vmatpush1.bf16.msra.mxu0 0
  %2379 = vmatprep.subr.bf16.mxu0 0
  %2380 = vmatpush1.bf16.msra.mxu0 0
  %2381 = vmatprep.subr.bf16.mxu0 0
  %2382 = vmatpush1.bf16.msra.mxu0 0
  %2383 = vmatprep.subr.bf16.mxu0 0
  %2384 = vmatpush1.bf16.msra.mxu0 0
  %2385 = vmatprep.subr.bf16.mxu0 0
  %2386 = vmatpush1.bf16.msra.mxu0 0
  %2387 = vmatprep.subr.bf16.mxu0 %v2256
  %2388 = vmatpush1.bf16.msra.mxu0 %v2255
  %2389 = vmatprep.subr.bf16.mxu0 %v2252
  %2390 = vmatpush1.bf16.msra.mxu0 %v2251
  %2391 = vmatprep.subr.bf16.mxu0 0
  %2392 = vmatpush2.bf16.msra.mxu0 0
  %2393 = vmatprep.subr.bf16.mxu0 0
  %2394 = vmatpush2.bf16.msra.mxu0 0
  %2395 = vmatprep.subr.bf16.mxu0 0
  %2396 = vmatpush2.bf16.msra.mxu0 0
  %2397 = vmatprep.subr.bf16.mxu0 0
  %2398 = vmatpush2.bf16.msra.mxu0 0
  %2399 = vmatprep.subr.bf16.mxu0 0
  %2400 = vmatpush2.bf16.msra.mxu0 0
  %2401 = vmatprep.subr.bf16.mxu0 0
  %2402 = vmatpush2.bf16.msra.mxu0 0
  %2403 = vmatprep.subr.bf16.mxu0 0
  %2404 = vmatpush2.bf16.msra.mxu0 0
  %2405 = vmatprep.subr.bf16.mxu0 0
  %2406 = vmatpush2.bf16.msra.mxu0 0
  %2407 = vmatprep.mubr.bf16.mxu0 0
  %2408 = vmatmul.mubr.bf16.gmra.mxu0 %v2332
  %v2409 = vpop.f32.mrf.mxu0
  %v2410 = vadd.f32 %v2369, %v2409
  %v2411 = vpop.f32.mrf.mxu0
  %v2412 = vadd.f32 %v2371, %v2411
  %v2413 = vpop.f32.mrf.mxu0
  %v2414 = vpop.f32.mrf.mxu0
  %2415 = vdwg.mxu0
  %2416 = vmatprep.subr.bf16.mxu0 %v2218
  %2417 = vmatpush1.bf16.msra.mxu0 %v2217
  %2418 = vmatprep.subr.bf16.mxu0 %v2214
  %2419 = vmatpush1.bf16.msra.mxu0 %v2213
  %2420 = vmatprep.subr.bf16.mxu0 %v2210
  %2421 = vmatpush1.bf16.msra.mxu0 %v2209
  %2422 = vmatprep.subr.bf16.mxu0 %v2206
  %2423 = vmatpush1.bf16.msra.mxu0 %v2205
  %2424 = vmatprep.subr.bf16.mxu0 %v2202
  %2425 = vmatpush1.bf16.msra.mxu0 %v2201
  %2426 = vmatprep.subr.bf16.mxu0 %v2198
  %2427 = vmatpush1.bf16.msra.mxu0 %v2197
  %2428 = vmatprep.subr.bf16.mxu0 %v2194
  %2429 = vmatpush1.bf16.msra.mxu0 %v2193
  %2430 = vmatprep.subr.bf16.mxu0 %v2190
  %2431 = vmatpush1.bf16.msra.mxu0 %v2189
  %2432 = vmatprep.subr.bf16.mxu0 %v2250
  %2433 = vmatpush2.bf16.msra.mxu0 %v2249
  %2434 = vmatprep.subr.bf16.mxu0 %v2246
  %2435 = vmatpush2.bf16.msra.mxu0 %v2245
  %2436 = vmatprep.subr.bf16.mxu0 %v2242
  %2437 = vmatpush2.bf16.msra.mxu0 %v2241
  %2438 = vmatprep.subr.bf16.mxu0 %v2238
  %2439 = vmatpush2.bf16.msra.mxu0 %v2237
  %2440 = vmatprep.subr.bf16.mxu0 %v2234
  %2441 = vmatpush2.bf16.msra.mxu0 %v2233
  %2442 = vmatprep.subr.bf16.mxu0 %v2230
  %2443 = vmatpush2.bf16.msra.mxu0 %v2229
  %2444 = vmatprep.subr.bf16.mxu0 %v2226
  %2445 = vmatpush2.bf16.msra.mxu0 %v2225
  %2446 = vmatprep.subr.bf16.mxu0 %v2222
  %2447 = vmatpush2.bf16.msra.mxu0 %v2221
  %2448 = vmatprep.mubr.bf16.mxu0 %v1967
  %2449 = vmatmul.mubr.bf16.gmra.mxu0 %v1966
  %v2450 = vpop.f32.mrf.mxu0
  %v2451 = vadd.f32 %v1959, %v2450
  %v2452 = vpop.f32.mrf.mxu0
  %v2453 = vadd.f32 %v1959, %v2452
  %v2454 = vpop.f32.mrf.mxu0
  %v2455 = vpop.f32.mrf.mxu0
  %2456 = vdwg.mxu0
  %2457 = vmatprep.subr.bf16.mxu0 0
  %2458 = vmatpush1.bf16.msra.mxu0 0
  %2459 = vmatprep.subr.bf16.mxu0 0
  %2460 = vmatpush1.bf16.msra.mxu0 0
  %2461 = vmatprep.subr.bf16.mxu0 0
  %2462 = vmatpush1.bf16.msra.mxu0 0
  %2463 = vmatprep.subr.bf16.mxu0 0
  %2464 = vmatpush1.bf16.msra.mxu0 0
  %2465 = vmatprep.subr.bf16.mxu0 0
  %2466 = vmatpush1.bf16.msra.mxu0 0
  %2467 = vmatprep.subr.bf16.mxu0 0
  %2468 = vmatpush1.bf16.msra.mxu0 0
  %2469 = vmatprep.subr.bf16.mxu0 %v2258
  %2470 = vmatpush1.bf16.msra.mxu0 %v2257
  %2471 = vmatprep.subr.bf16.mxu0 %v2254
  %2472 = vmatpush1.bf16.msra.mxu0 %v2253
  %2473 = vmatprep.subr.bf16.mxu0 0
  %2474 = vmatpush2.bf16.msra.mxu0 0
  %2475 = vmatprep.subr.bf16.mxu0 0
  %2476 = vmatpush2.bf16.msra.mxu0 0
  %2477 = vmatprep.subr.bf16.mxu0 0
  %2478 = vmatpush2.bf16.msra.mxu0 0
  %2479 = vmatprep.subr.bf16.mxu0 0
  %2480 = vmatpush2.bf16.msra.mxu0 0
  %2481 = vmatprep.subr.bf16.mxu0 0
  %2482 = vmatpush2.bf16.msra.mxu0 0
  %2483 = vmatprep.subr.bf16.mxu0 0
  %2484 = vmatpush2.bf16.msra.mxu0 0
  %2485 = vmatprep.subr.bf16.mxu0 0
  %2486 = vmatpush2.bf16.msra.mxu0 0
  %2487 = vmatprep.subr.bf16.mxu0 0
  %2488 = vmatpush2.bf16.msra.mxu0 0
  %2489 = vmatprep.mubr.bf16.mxu0 0
  %2490 = vmatmul.mubr.bf16.gmra.mxu0 %v2332
  %v2491 = vpop.f32.mrf.mxu0
  %v2492 = vadd.f32 %v2451, %v2491
  %v2493 = vpop.f32.mrf.mxu0
  %v2494 = vadd.f32 %v2453, %v2493
  %v2495 = vpop.f32.mrf.mxu0
  %v2496 = vpop.f32.mrf.mxu0
  %2497 = vdwg.mxu0
  %2498 = vst [vmem:[%s7] sm:$0xff] %v2410
  %2499 = vst [vmem:[%s7 + $0x8] sm:$0xff] %v2412
  %2500 = vst [vmem:[%s7 + $0x10] sm:$0xff] %v2492
  %2501 = vst [vmem:[%s7 + $0x18] sm:$0xff] %v2494
  // Predicated region
  $region30: #{convnet_forward.1} parent=0 // pred_check
    _
  $region31: #{convnet_forward.1} parent=0 // pred_check_branch
    %2503 = sbr.rel (0) target = $region33
  $region32: #{convnet_forward.1} parent=0 // pred_region
    _
  $region33: #{convnet_forward.1} parent=0 // pred_fallthru
    _
  // Predicated region
  $region34: #{convnet_forward.1} parent=0 // pred_check
    _
  $region35: #{convnet_forward.1} parent=0 // pred_check_branch
    %2505 = sbr.rel (0) target = $region37
  $region36: #{convnet_forward.1} parent=0 // pred_region
    _
  $region37: #{convnet_forward.1} parent=0 // pred_fallthru
    _

</llo_original>
